<compile_context>
chip_gen: v7x
topology: tpu7x:2x2x1
jax: 0.10.0
libtpu: 0.0.40
codegen_flags: <defaults>
</compile_context>

<pallas_src>
import jax
import jax.numpy as jnp
from jax import lax
from jax.experimental import pallas as pl
from jax.experimental.pallas import tpu as pltpu

_EPS = 1e-5


def _pick_chunk(S, cap=256):
    """Largest 16-row-aligned divisor of S that is <= cap (or S itself)."""
    if S <= cap:
        return S
    for t in range(cap, 15, -1):
        if S % t == 0 and t % 16 == 0:
            return t
    return S


def _pick_seq_tile(S, cap=512):
    """Sequence tile for stage 2 (halo-free, any aligned divisor works)."""
    return _pick_chunk(S, cap)


def _vmem_limit_bytes():
    """Scoped-VMEM limit derived from the chip, with headroom for compiler scratch."""
    try:
        cap = pltpu.get_tpu_info().vmem_capacity_bytes
    except Exception:
        cap = 64 * 1024 * 1024          # conservative (v7x-sized) fallback
    return max(32 * 1024 * 1024, min(int(cap * 0.65), 100 * 1024 * 1024))


def _stage1_kernel(x_ref, ln_g_ref, ln_b_ref, w1a_ref, b1a_ref,
                   w1g_ref, b1g_ref, wdw_ref,
                   dw_ref, sum_ref, sumsq_ref, pad_ref):
    """LayerNorm -> PW1 (split GLU halves, bf16 MXU) -> GLU -> depthwise conv.

    Block = one batch element: x_ref [1, S, D], dw_ref [1, S, 2D] (bf16).
    Also emits per-tile *centred* BatchNorm partial statistics in f32.
    """
    S = x_ref.shape[1]
    K, C2 = wdw_ref.shape
    PAD = (K - 1) // 2
    FRONT = pad_ref.shape[0] - S - PAD            # 16-row aligned front pad

    # ---- zero only the padding strips of the bf16 scratch (both 16-aligned starts) ----
    if FRONT > 0:
        pad_ref[0:FRONT, :] = jnp.zeros((FRONT, C2), jnp.bfloat16)
    if PAD > 0:
        back0 = FRONT + (S // 16) * 16            # 16-aligned static start
        pad_ref[back0:FRONT + S + PAD, :] = jnp.zeros(
            (FRONT + S + PAD - back0, C2), jnp.bfloat16)

    # ---- LayerNorm -> PW1 (two GLU halves) -> GLU, in row chunks (bounded live ranges) ----
    CHUNK = _pick_chunk(S)
    n_chunks = S // CHUNK

    def ln_pw1_glu(r0):
        xs = x_ref[0, pl.ds(r0, CHUNK), :].astype(jnp.float32)       # [CHUNK, D]
        mu = jnp.mean(xs, axis=-1, keepdims=True)
        var = jnp.mean((xs - mu) ** 2, axis=-1, keepdims=True)       # biased, like torch
        xn = (xs - mu) * lax.rsqrt(var + _EPS) * ln_g_ref[...] + ln_b_ref[...]
        xn_b = xn.astype(jnp.bfloat16)                               # MXU operand
        a = jnp.dot(xn_b, w1a_ref[...],
                    preferred_element_type=jnp.float32) + b1a_ref[...]
        g = jnp.dot(xn_b, w1g_ref[...],
                    preferred_element_type=jnp.float32) + b1g_ref[...]
        glu = a * jax.nn.sigmoid(g)                                  # [CHUNK, C2] f32
        pad_ref[pl.ds(FRONT + r0, CHUNK), :] = glu.astype(jnp.bfloat16)

    if n_chunks == 1:
        ln_pw1_glu(0)                                                # fully static path
    else:
        def body(c, carry):
            ln_pw1_glu(pl.multiple_of(c * CHUNK, 16))
            return carry
        lax.fori_loop(0, n_chunks, body, 0, unroll=n_chunks <= 8)

    # ---- DepthWiseConv (padding='same', groups == channels), f32 accumulate ----
    wdw = wdw_ref[...]                                               # [K, C2] f32, hoisted
    acc = pad_ref[pl.ds(FRONT - PAD, S), :].astype(jnp.float32) * wdw[0:1, :]
    for k in range(1, K):                                            # static unroll
        tap = pad_ref[pl.ds(FRONT - PAD + k, S), :].astype(jnp.float32)
        acc = acc + tap * wdw[k:k + 1, :]
    # Depthwise bias intentionally omitted: a per-channel bias ahead of
    # training-mode BatchNorm cancels exactly in (x - mean(x)).

    # ---- per-tile centred BatchNorm partials (f32, before the bf16 downcast) ----
    tsum = jnp.sum(acc, axis=0, keepdims=True)                       # [1, C2]
    tmean = tsum * (1.0 / S)
    sum_ref[0] = tsum
    sumsq_ref[0] = jnp.sum((acc - tmean) ** 2, axis=0, keepdims=True)

    dw_ref[0] = acc.astype(jnp.bfloat16)


def _stage2_kernel(dw_ref, x_ref, scale_ref, shift_ref, w2_ref, b2_ref, out_ref):
    """BatchNorm (precomputed scale/shift) -> Swish -> PW2 (bf16 MXU) -> +x."""
    dw = dw_ref[0].astype(jnp.float32)                               # [TS, C2]
    bn = dw * scale_ref[...] + shift_ref[...]
    sw = bn * jax.nn.sigmoid(bn)                                     # Swish
    y = jnp.dot(sw.astype(jnp.bfloat16), w2_ref[...],
                preferred_element_type=jnp.float32) + b2_ref[...]    # [TS, D]
    # Dropout(p=0.0) is the identity; residual connection.
    out_ref[0] = (y + x_ref[0].astype(jnp.float32)).astype(out_ref.dtype)


def conv_module_forward(x, params):
    B, S, D = x.shape
    K, C2 = params["wdw"].shape
    assert K % 2 == 1, "torch padding='same' with even K is asymmetric"
    PAD = (K - 1) // 2
    FRONT = ((PAD + 15) // 16) * 16     # front pad aligned for bf16 sublane packing

    # Split PW1 into the two GLU halves; bf16 weights feed the MXU.
    w1a = params["w1"][:, :C2].astype(jnp.bfloat16)
    w1g = params["w1"][:, C2:].astype(jnp.bfloat16)
    b1a = params["b1"][:, :C2]
    b1g = params["b1"][:, C2:]
    w2 = params["w2"].astype(jnp.bfloat16)

    vmem_limit = _vmem_limit_bytes()

    def cparams(n_axes):
        return pltpu.CompilerParams(
            dimension_semantics=("parallel",) * n_axes,
            vmem_limit_bytes=vmem_limit)

    bmap3 = lambda b: (b, 0, 0)
    smap3 = lambda b, s: (b, s, 0)
    fixed1 = lambda b: (0, 0)
    fixed2 = lambda b, s: (0, 0)

    # Constant-index operands: single-buffered (they are never re-DMAed).
    def const_spec(shape, index_map):
        return pl.BlockSpec(shape, index_map,
                            pipeline_mode=pl.Buffered(buffer_count=1))

    # ---- Stage 1: LN -> PW1/GLU -> depthwise conv + centred BN partial sums ----
    # TODO(synk): add S-tiling with a recomputed PAD-row halo if per-sequence
    #             working set approaches the v7x 64 MiB/TC VMEM.
    dw, psum, psumsq = pl.pallas_call(
        _stage1_kernel,
        out_shape=(
            jax.ShapeDtypeStruct((B, S, C2), jnp.bfloat16),   # dw (bf16: halves HBM traffic)
            jax.ShapeDtypeStruct((B, 1, C2), jnp.float32),    # per-tile channel sum
            jax.ShapeDtypeStruct((B, 1, C2), jnp.float32),    # per-tile centred sum-sq
        ),
        grid_spec=pltpu.PrefetchScalarGridSpec(
            num_scalar_prefetch=0,
            grid=(B,),
            in_specs=[
                pl.BlockSpec((1, S, D), bmap3),               # x
                const_spec((1, D), fixed1),                   # ln_g
                const_spec((1, D), fixed1),                   # ln_b
                const_spec((D, C2), fixed1),                  # w1a (bf16)
                const_spec((1, C2), fixed1),                  # b1a
                const_spec((D, C2), fixed1),                  # w1g (bf16)
                const_spec((1, C2), fixed1),                  # b1g
                const_spec((K, C2), fixed1),                  # depthwise weight
            ],
            out_specs=(
                pl.BlockSpec((1, S, C2), bmap3),
                pl.BlockSpec((1, 1, C2), bmap3),
                pl.BlockSpec((1, 1, C2), bmap3),
            ),
            scratch_shapes=[pltpu.VMEM((FRONT + S + PAD, C2), jnp.bfloat16)],
        ),
        compiler_params=cparams(1),
    )(x, params["ln_g"], params["ln_b"], w1a, b1a, w1g, b1g, params["wdw"])

    # ---- Finalize training-mode BatchNorm stats (tiny host-side reduction) ----
    n = B * S
    mean = jnp.sum(psum, axis=(0, 1)) / n                            # [C2]
    tile_mean = psum[:, 0, :] / S                                    # [B, C2]
    var = (jnp.sum(psumsq, axis=(0, 1))
           + S * jnp.sum((tile_mean - mean) ** 2, axis=0)) / n       # centred combine
    var = jnp.maximum(var, 0.0)
    scale = params["bn_g"] * lax.rsqrt(var + _EPS)                   # [1, C2]
    shift = params["bn_b"] - mean * scale                            # [1, C2]

    # ---- Stage 2: BN apply -> Swish -> PW2 -> residual (grid over B x S-tiles) ----
    TS = _pick_seq_tile(S)
    out = pl.pallas_call(
        _stage2_kernel,
        out_shape=jax.ShapeDtypeStruct((B, S, D), x.dtype),
        grid_spec=pltpu.PrefetchScalarGridSpec(
            num_scalar_prefetch=0,
            grid=(B, S // TS),
            in_specs=[
                pl.BlockSpec((1, TS, C2), smap3),                    # dw (bf16)
                pl.BlockSpec((1, TS, D), smap3),                     # x (residual)
                const_spec((1, C2), fixed2),                         # BN scale
                const_spec((1, C2), fixed2),                         # BN shift
                const_spec((C2, D), fixed2),                         # w2 (bf16)
                const_spec((1, D), fixed2),                          # b2
            ],
            out_specs=pl.BlockSpec((1, TS, D), smap3),
        ),
        input_output_aliases={1: 0},        # reuse x's HBM buffer for the output
        compiler_params=cparams(2),
    )(dw, x, scale, shift, w2, params["b2"])
    return out


def conv_module_reference(x, params):
    """Pure-JAX reference of the same math (bf16 MXU operands emulated)."""
    B, S, D = x.shape
    K, C2 = params["wdw"].shape
    PAD = (K - 1) // 2
    mu = jnp.mean(x, -1, keepdims=True)
    var = jnp.mean((x - mu) ** 2, -1, keepdims=True)
    xn = (x - mu) * lax.rsqrt(var + _EPS) * params["ln_g"] + params["ln_b"]
    h = jnp.dot(xn.reshape(B * S, D).astype(jnp.bfloat16),
                params["w1"].astype(jnp.bfloat16),
                preferred_element_type=jnp.float32) + params["b1"]
    h = h.reshape(B, S, 2 * C2)
    glu = h[..., :C2] * jax.nn.sigmoid(h[..., C2:])
    gp = jnp.pad(glu, ((0, 0), (PAD, PAD), (0, 0)))
    dw = sum(gp[:, k:k + S, :] * params["wdw"][k] for k in range(K)) + params["bdw"]
    dw2 = dw.reshape(B * S, C2)
    bmu = jnp.mean(dw2, 0, keepdims=True)
    bvar = jnp.mean((dw2 - bmu) ** 2, 0, keepdims=True)
    bn = (dw2 - bmu) * lax.rsqrt(bvar + _EPS) * params["bn_g"] + params["bn_b"]
    sw = bn * jax.nn.sigmoid(bn)
    y = jnp.dot(sw.astype(jnp.bfloat16), params["w2"].astype(jnp.bfloat16),
                preferred_element_type=jnp.float32) + params["b2"]
    return y.reshape(B, S, D) + x


if __name__ == "__main__":
    B, S, D = 2, 16, 32          # [bs, seq_len, dim]
    K = 7                        # depthwise kernel size (module default is 31)
    C2, C4 = 2 * D, 4 * D

    key = jax.random.PRNGKey(0)
    ks = jax.random.split(key, 11)
    sc = 0.1
    params = {
        # LayerNorm(dim)
        "ln_g": 1.0 + sc * jax.random.normal(ks[0], (1, D), jnp.float32),
        "ln_b": sc * jax.random.normal(ks[1], (1, D), jnp.float32),
        # PointWiseConv(dim, 4*dim): torch weight [4D, D, 1] stored transposed [D, 4D]
        "w1": sc * jax.random.normal(ks[2], (D, C4), jnp.float32),
        "b1": sc * jax.random.normal(ks[3], (1, C4), jnp.float32),
        # DepthWiseConv(2*dim, 2*dim, K): torch weight [2D, 1, K] stored as [K, 2D]
        "wdw": sc * jax.random.normal(ks[4], (K, C2), jnp.float32),
        "bdw": sc * jax.random.normal(ks[5], (1, C2), jnp.float32),
        # BatchNorm1d(2*dim) affine params (training-mode batch statistics)
        "bn_g": 1.0 + sc * jax.random.normal(ks[6], (1, C2), jnp.float32),
        "bn_b": sc * jax.random.normal(ks[7], (1, C2), jnp.float32),
        # PointWiseConv(2*dim, dim): torch weight [D, 2D, 1] stored transposed [2D, D]
        "w2": sc * jax.random.normal(ks[8], (C2, D), jnp.float32),
        "b2": sc * jax.random.normal(ks[9], (1, D), jnp.float32),
    }
    x = jax.random.normal(ks[10], (B, S, D), jnp.float32)

    out = jax.jit(conv_module_forward)(x, params)
    out = jax.block_until_ready(out)

    ref = conv_module_reference(x, params)
    assert out.shape == (B, S, D)
    assert bool(jnp.allclose(out, ref, rtol=1e-2, atol=1e-2)), "mismatch vs JAX reference"

    print("KERNEL_OK")
</pallas_src>

<mosaic_0001>
module attributes {stable_mosaic.version = 11 : i64} {
  func.func @_stage1_kernel(%arg0: i32, %arg1: memref<1x16x32xf32, #tpu.memory_space<vmem>>, %arg2: memref<1x32xf32, #tpu.memory_space<vmem>>, %arg3: memref<1x32xf32, #tpu.memory_space<vmem>>, %arg4: memref<32x64xbf16, #tpu.memory_space<vmem>>, %arg5: memref<1x64xf32, #tpu.memory_space<vmem>>, %arg6: memref<32x64xbf16, #tpu.memory_space<vmem>>, %arg7: memref<1x64xf32, #tpu.memory_space<vmem>>, %arg8: memref<7x64xf32, #tpu.memory_space<vmem>>, %arg9: memref<1x16x64xbf16, #tpu.memory_space<vmem>>, %arg10: memref<1x1x64xf32, #tpu.memory_space<vmem>>, %arg11: memref<1x1x64xf32, #tpu.memory_space<vmem>>, %arg12: memref<35x64xbf16, #tpu.memory_space<vmem>>) attributes {dimension_semantics = [#tpu.dimension_semantics<parallel>], iteration_bounds = array<i64: 2>, scalar_prefetch = 0 : i64, scratch_operands = 1 : i64, tpu.core_type = #tpu.core_type<tc>, window_params = [{transform_indices = @transform_0, window_bounds = array<i64: 1, 16, 32>}, {pipeline_mode = #tpu.pipeline_mode<synchronous>, transform_indices = @transform_1, window_bounds = array<i64: 1, 32>}, {pipeline_mode = #tpu.pipeline_mode<synchronous>, transform_indices = @transform_2, window_bounds = array<i64: 1, 32>}, {pipeline_mode = #tpu.pipeline_mode<synchronous>, transform_indices = @transform_3, window_bounds = array<i64: 32, 64>}, {pipeline_mode = #tpu.pipeline_mode<synchronous>, transform_indices = @transform_4, window_bounds = array<i64: 1, 64>}, {pipeline_mode = #tpu.pipeline_mode<synchronous>, transform_indices = @transform_5, window_bounds = array<i64: 32, 64>}, {pipeline_mode = #tpu.pipeline_mode<synchronous>, transform_indices = @transform_6, window_bounds = array<i64: 1, 64>}, {pipeline_mode = #tpu.pipeline_mode<synchronous>, transform_indices = @transform_7, window_bounds = array<i64: 7, 64>}, {transform_indices = @transform_8, window_bounds = array<i64: 1, 16, 64>}, {transform_indices = @transform_9, window_bounds = array<i64: 1, 1, 64>}, {transform_indices = @transform_10, window_bounds = array<i64: 1, 1, 64>}]} {
    %cst = arith.constant 0.000000e+00 : bf16
    %0 = vector.broadcast %cst : bf16 to vector<16x64xbf16>
    %c0 = arith.constant 0 : index
    %c0_0 = arith.constant 0 : index
    %1 = vector.load %arg12[%c0, %c0_0] : memref<35x64xbf16, #tpu.memory_space<vmem>>, vector<16x64xbf16>
    tpu.vector_store %arg12[%c0, %c0_0], %0 {strides = array<i32>} : memref<35x64xbf16, #tpu.memory_space<vmem>>, vector<16x64xbf16>,
    %cst_1 = arith.constant 0.000000e+00 : bf16
    %2 = vector.broadcast %cst_1 : bf16 to vector<3x64xbf16>
    %c32 = arith.constant 32 : index
    %c0_2 = arith.constant 0 : index
    %3 = vector.load %arg12[%c32, %c0_2] : memref<35x64xbf16, #tpu.memory_space<vmem>>, vector<3x64xbf16>
    tpu.vector_store %arg12[%c32, %c0_2], %2 {strides = array<i32>} : memref<35x64xbf16, #tpu.memory_space<vmem>>, vector<3x64xbf16>,
    %c0_3 = arith.constant 0 : index
    %c0_4 = arith.constant 0 : index
    %c0_5 = arith.constant 0 : index
    %4 = vector.load %arg1[%c0_3, %c0_4, %c0_5] : memref<1x16x32xf32, #tpu.memory_space<vmem>>, vector<1x16x32xf32>
    %5 = vector.shape_cast %4 : vector<1x16x32xf32> to vector<16x32xf32>
    %cst_6 = arith.constant dense<0.000000e+00> : vector<16xf32>
    %6 = vector.multi_reduction <add>, %5, %cst_6 [1] : vector<16x32xf32> to vector<16xf32>
    %7 = vector.shape_cast %6 : vector<16xf32> to vector<16x1xf32>
    %cst_7 = arith.constant 3.200000e+01 : f32
    %8 = vector.broadcast %cst_7 : f32 to vector<16x1xf32>
    %9 = arith.divf %7, %8 : vector<16x1xf32>
    %10 = vector.broadcast %9 : vector<16x1xf32> to vector<16x32xf32>
    %11 = arith.subf %5, %10 : vector<16x32xf32>
    %12 = arith.mulf %11, %11 : vector<16x32xf32>
    %cst_8 = arith.constant dense<0.000000e+00> : vector<16xf32>
    %13 = vector.multi_reduction <add>, %12, %cst_8 [1] : vector<16x32xf32> to vector<16xf32>
    %14 = vector.shape_cast %13 : vector<16xf32> to vector<16x1xf32>
    %cst_9 = arith.constant 3.200000e+01 : f32
    %15 = vector.broadcast %cst_9 : f32 to vector<16x1xf32>
    %16 = arith.divf %14, %15 : vector<16x1xf32>
    %17 = vector.broadcast %9 : vector<16x1xf32> to vector<16x32xf32>
    %18 = arith.subf %5, %17 : vector<16x32xf32>
    %cst_10 = arith.constant 9.99999974E-6 : f32
    %19 = vector.broadcast %cst_10 : f32 to vector<16x1xf32>
    %20 = arith.addf %16, %19 : vector<16x1xf32>
    %21 = math.rsqrt %20 : vector<16x1xf32>
    %22 = vector.broadcast %21 : vector<16x1xf32> to vector<16x32xf32>
    %23 = arith.mulf %18, %22 : vector<16x32xf32>
    %c0_11 = arith.constant 0 : index
    %c0_12 = arith.constant 0 : index
    %24 = vector.load %arg2[%c0_11, %c0_12] : memref<1x32xf32, #tpu.memory_space<vmem>>, vector<1x32xf32>
    %25 = vector.broadcast %24 : vector<1x32xf32> to vector<16x32xf32>
    %26 = arith.mulf %23, %25 : vector<16x32xf32>
    %c0_13 = arith.constant 0 : index
    %c0_14 = arith.constant 0 : index
    %27 = vector.load %arg3[%c0_13, %c0_14] : memref<1x32xf32, #tpu.memory_space<vmem>>, vector<1x32xf32>
    %28 = vector.broadcast %27 : vector<1x32xf32> to vector<16x32xf32>
    %29 = arith.addf %26, %28 : vector<16x32xf32>
    %30 = arith.truncf %29 : vector<16x32xf32> to vector<16x32xbf16>
    %c0_15 = arith.constant 0 : index
    %c0_16 = arith.constant 0 : index
    %31 = vector.load %arg4[%c0_15, %c0_16] : memref<32x64xbf16, #tpu.memory_space<vmem>>, vector<32x64xbf16>
    %cst_17 = arith.constant dense<0.000000e+00> : vector<16x64xf32>
    %32 = tpu.matmul %30, %31, %cst_17 {dimension_numbers = #tpu.dot_dimension_numbers<[1], [0], [0], [1], [0, 0, 1, 1], [], []>} : vector<16x32xbf16>, vector<32x64xbf16>, vector<16x64xf32> -> vector<16x64xf32>
    %c0_18 = arith.constant 0 : index
    %c0_19 = arith.constant 0 : index
    %33 = vector.load %arg5[%c0_18, %c0_19] : memref<1x64xf32, #tpu.memory_space<vmem>>, vector<1x64xf32>
    %34 = vector.broadcast %33 : vector<1x64xf32> to vector<16x64xf32>
    %35 = arith.addf %32, %34 : vector<16x64xf32>
    %c0_20 = arith.constant 0 : index
    %c0_21 = arith.constant 0 : index
    %36 = vector.load %arg6[%c0_20, %c0_21] : memref<32x64xbf16, #tpu.memory_space<vmem>>, vector<32x64xbf16>
    %cst_22 = arith.constant dense<0.000000e+00> : vector<16x64xf32>
    %37 = tpu.matmul %30, %36, %cst_22 {dimension_numbers = #tpu.dot_dimension_numbers<[1], [0], [0], [1], [0, 0, 1, 1], [], []>} : vector<16x32xbf16>, vector<32x64xbf16>, vector<16x64xf32> -> vector<16x64xf32>
    %c0_23 = arith.constant 0 : index
    %c0_24 = arith.constant 0 : index
    %38 = vector.load %arg7[%c0_23, %c0_24] : memref<1x64xf32, #tpu.memory_space<vmem>>, vector<1x64xf32>
    %39 = vector.broadcast %38 : vector<1x64xf32> to vector<16x64xf32>
    %40 = arith.addf %37, %39 : vector<16x64xf32>
    %41 = arith.negf %40 : vector<16x64xf32>
    %42 = math.exp %41 : vector<16x64xf32>
    %cst_25 = arith.constant 1.000000e+00 : f32
    %43 = vector.broadcast %cst_25 : f32 to vector<16x64xf32>
    %44 = arith.addf %43, %42 : vector<16x64xf32>
    %45 = arith.divf %43, %44 : vector<16x64xf32>
    %46 = arith.mulf %35, %45 : vector<16x64xf32>
    %47 = arith.truncf %46 : vector<16x64xf32> to vector<16x64xbf16>
    %c16 = arith.constant 16 : index
    %c0_26 = arith.constant 0 : index
    %48 = vector.load %arg12[%c16, %c0_26] : memref<35x64xbf16, #tpu.memory_space<vmem>>, vector<16x64xbf16>
    tpu.vector_store %arg12[%c16, %c0_26], %47 {strides = array<i32>} : memref<35x64xbf16, #tpu.memory_space<vmem>>, vector<16x64xbf16>,
    %c0_27 = arith.constant 0 : index
    %c0_28 = arith.constant 0 : index
    %49 = vector.load %arg8[%c0_27, %c0_28] : memref<7x64xf32, #tpu.memory_space<vmem>>, vector<7x64xf32>
    %c13 = arith.constant 13 : index
    %c0_29 = arith.constant 0 : index
    %50 = vector.load %arg12[%c13, %c0_29] : memref<35x64xbf16, #tpu.memory_space<vmem>>, vector<16x64xbf16>
    %51 = arith.extf %50 : vector<16x64xbf16> to vector<16x64xf32>
    %52 = vector.extract_strided_slice %49 {offsets = [0, 0], sizes = [1, 64], strides = [1, 1]} : vector<7x64xf32> to vector<1x64xf32>
    %53 = vector.broadcast %52 : vector<1x64xf32> to vector<16x64xf32>
    %54 = arith.mulf %51, %53 : vector<16x64xf32>
    %c14 = arith.constant 14 : index
    %c0_30 = arith.constant 0 : index
    %55 = vector.load %arg12[%c14, %c0_30] : memref<35x64xbf16, #tpu.memory_space<vmem>>, vector<16x64xbf16>
    %56 = arith.extf %55 : vector<16x64xbf16> to vector<16x64xf32>
    %57 = vector.extract_strided_slice %49 {offsets = [1, 0], sizes = [1, 64], strides = [1, 1]} : vector<7x64xf32> to vector<1x64xf32>
    %58 = vector.broadcast %57 : vector<1x64xf32> to vector<16x64xf32>
    %59 = arith.mulf %56, %58 : vector<16x64xf32>
    %60 = arith.addf %54, %59 : vector<16x64xf32>
    %c15 = arith.constant 15 : index
    %c0_31 = arith.constant 0 : index
    %61 = vector.load %arg12[%c15, %c0_31] : memref<35x64xbf16, #tpu.memory_space<vmem>>, vector<16x64xbf16>
    %62 = arith.extf %61 : vector<16x64xbf16> to vector<16x64xf32>
    %63 = vector.extract_strided_slice %49 {offsets = [2, 0], sizes = [1, 64], strides = [1, 1]} : vector<7x64xf32> to vector<1x64xf32>
    %64 = vector.broadcast %63 : vector<1x64xf32> to vector<16x64xf32>
    %65 = arith.mulf %62, %64 : vector<16x64xf32>
    %66 = arith.addf %60, %65 : vector<16x64xf32>
    %c16_32 = arith.constant 16 : index
    %c0_33 = arith.constant 0 : index
    %67 = vector.load %arg12[%c16_32, %c0_33] : memref<35x64xbf16, #tpu.memory_space<vmem>>, vector<16x64xbf16>
    %68 = arith.extf %67 : vector<16x64xbf16> to vector<16x64xf32>
    %69 = vector.extract_strided_slice %49 {offsets = [3, 0], sizes = [1, 64], strides = [1, 1]} : vector<7x64xf32> to vector<1x64xf32>
    %70 = vector.broadcast %69 : vector<1x64xf32> to vector<16x64xf32>
    %71 = arith.mulf %68, %70 : vector<16x64xf32>
    %72 = arith.addf %66, %71 : vector<16x64xf32>
    %c17 = arith.constant 17 : index
    %c0_34 = arith.constant 0 : index
    %73 = vector.load %arg12[%c17, %c0_34] : memref<35x64xbf16, #tpu.memory_space<vmem>>, vector<16x64xbf16>
    %74 = arith.extf %73 : vector<16x64xbf16> to vector<16x64xf32>
    %75 = vector.extract_strided_slice %49 {offsets = [4, 0], sizes = [1, 64], strides = [1, 1]} : vector<7x64xf32> to vector<1x64xf32>
    %76 = vector.broadcast %75 : vector<1x64xf32> to vector<16x64xf32>
    %77 = arith.mulf %74, %76 : vector<16x64xf32>
    %78 = arith.addf %72, %77 : vector<16x64xf32>
    %c18 = arith.constant 18 : index
    %c0_35 = arith.constant 0 : index
    %79 = vector.load %arg12[%c18, %c0_35] : memref<35x64xbf16, #tpu.memory_space<vmem>>, vector<16x64xbf16>
    %80 = arith.extf %79 : vector<16x64xbf16> to vector<16x64xf32>
    %81 = vector.extract_strided_slice %49 {offsets = [5, 0], sizes = [1, 64], strides = [1, 1]} : vector<7x64xf32> to vector<1x64xf32>
    %82 = vector.broadcast %81 : vector<1x64xf32> to vector<16x64xf32>
    %83 = arith.mulf %80, %82 : vector<16x64xf32>
    %84 = arith.addf %78, %83 : vector<16x64xf32>
    %c19 = arith.constant 19 : index
    %c0_36 = arith.constant 0 : index
    %85 = vector.load %arg12[%c19, %c0_36] : memref<35x64xbf16, #tpu.memory_space<vmem>>, vector<16x64xbf16>
    %86 = arith.extf %85 : vector<16x64xbf16> to vector<16x64xf32>
    %87 = vector.extract_strided_slice %49 {offsets = [6, 0], sizes = [1, 64], strides = [1, 1]} : vector<7x64xf32> to vector<1x64xf32>
    %88 = vector.broadcast %87 : vector<1x64xf32> to vector<16x64xf32>
    %89 = arith.mulf %86, %88 : vector<16x64xf32>
    %90 = arith.addf %84, %89 : vector<16x64xf32>
    %cst_37 = arith.constant dense<0.000000e+00> : vector<64xf32>
    %91 = vector.multi_reduction <add>, %90, %cst_37 [0] : vector<16x64xf32> to vector<64xf32>
    %92 = vector.shape_cast %91 : vector<64xf32> to vector<1x64xf32>
    %cst_38 = arith.constant 6.250000e-02 : f32
    %93 = vector.broadcast %cst_38 : f32 to vector<1x64xf32>
    %94 = arith.mulf %92, %93 : vector<1x64xf32>
    %c0_39 = arith.constant 0 : index
    %c0_40 = arith.constant 0 : index
    %c0_41 = arith.constant 0 : index
    %95 = vector.load %arg10[%c0_39, %c0_40, %c0_41] : memref<1x1x64xf32, #tpu.memory_space<vmem>>, vector<1x1x64xf32>
    %96 = vector.shape_cast %95 : vector<1x1x64xf32> to vector<1x64xf32>
    %97 = vector.shape_cast %92 : vector<1x64xf32> to vector<1x1x64xf32>
    tpu.vector_store %arg10[%c0_39, %c0_40, %c0_41], %97 {strides = array<i32>} : memref<1x1x64xf32, #tpu.memory_space<vmem>>, vector<1x1x64xf32>,
    %98 = vector.broadcast %94 : vector<1x64xf32> to vector<16x64xf32>
    %99 = arith.subf %90, %98 : vector<16x64xf32>
    %100 = arith.mulf %99, %99 : vector<16x64xf32>
    %cst_42 = arith.constant dense<0.000000e+00> : vector<64xf32>
    %101 = vector.multi_reduction <add>, %100, %cst_42 [0] : vector<16x64xf32> to vector<64xf32>
    %102 = vector.shape_cast %101 : vector<64xf32> to vector<1x64xf32>
    %c0_43 = arith.constant 0 : index
    %c0_44 = arith.constant 0 : index
    %c0_45 = arith.constant 0 : index
    %103 = vector.load %arg11[%c0_43, %c0_44, %c0_45] : memref<1x1x64xf32, #tpu.memory_space<vmem>>, vector<1x1x64xf32>
    %104 = vector.shape_cast %103 : vector<1x1x64xf32> to vector<1x64xf32>
    %105 = vector.shape_cast %102 : vector<1x64xf32> to vector<1x1x64xf32>
    tpu.vector_store %arg11[%c0_43, %c0_44, %c0_45], %105 {strides = array<i32>} : memref<1x1x64xf32, #tpu.memory_space<vmem>>, vector<1x1x64xf32>,
    %106 = arith.truncf %90 : vector<16x64xf32> to vector<16x64xbf16>
    %c0_46 = arith.constant 0 : index
    %c0_47 = arith.constant 0 : index
    %c0_48 = arith.constant 0 : index
    %107 = vector.load %arg9[%c0_46, %c0_47, %c0_48] : memref<1x16x64xbf16, #tpu.memory_space<vmem>>, vector<1x16x64xbf16>
    %108 = vector.shape_cast %107 : vector<1x16x64xbf16> to vector<16x64xbf16>
    %109 = vector.shape_cast %106 : vector<16x64xbf16> to vector<1x16x64xbf16>
    tpu.vector_store %arg9[%c0_46, %c0_47, %c0_48], %109 {strides = array<i32>} : memref<1x16x64xbf16, #tpu.memory_space<vmem>>, vector<1x16x64xbf16>,
    return
  }
  func.func @transform_0(%arg0: i32) -> (i32, i32, i32) {
    %c0_i32 = arith.constant 0 : i32
    %c0_i32_0 = arith.constant 0 : i32
    %c0_i32_1 = arith.constant 0 : i32
    return %arg0, %c0_i32, %c0_i32_0 : i32, i32, i32
  }
  func.func @transform_1(%arg0: i32) -> (i32, i32) {
    %c0_i32 = arith.constant 0 : i32
    %c0_i32_0 = arith.constant 0 : i32
    %c0_i32_1 = arith.constant 0 : i32
    return %c0_i32, %c0_i32_0 : i32, i32
  }
  func.func @transform_2(%arg0: i32) -> (i32, i32) {
    %c0_i32 = arith.constant 0 : i32
    %c0_i32_0 = arith.constant 0 : i32
    %c0_i32_1 = arith.constant 0 : i32
    return %c0_i32, %c0_i32_0 : i32, i32
  }
  func.func @transform_3(%arg0: i32) -> (i32, i32) {
    %c0_i32 = arith.constant 0 : i32
    %c0_i32_0 = arith.constant 0 : i32
    %c0_i32_1 = arith.constant 0 : i32
    return %c0_i32, %c0_i32_0 : i32, i32
  }
  func.func @transform_4(%arg0: i32) -> (i32, i32) {
    %c0_i32 = arith.constant 0 : i32
    %c0_i32_0 = arith.constant 0 : i32
    %c0_i32_1 = arith.constant 0 : i32
    return %c0_i32, %c0_i32_0 : i32, i32
  }
  func.func @transform_5(%arg0: i32) -> (i32, i32) {
    %c0_i32 = arith.constant 0 : i32
    %c0_i32_0 = arith.constant 0 : i32
    %c0_i32_1 = arith.constant 0 : i32
    return %c0_i32, %c0_i32_0 : i32, i32
  }
  func.func @transform_6(%arg0: i32) -> (i32, i32) {
    %c0_i32 = arith.constant 0 : i32
    %c0_i32_0 = arith.constant 0 : i32
    %c0_i32_1 = arith.constant 0 : i32
    return %c0_i32, %c0_i32_0 : i32, i32
  }
  func.func @transform_7(%arg0: i32) -> (i32, i32) {
    %c0_i32 = arith.constant 0 : i32
    %c0_i32_0 = arith.constant 0 : i32
    %c0_i32_1 = arith.constant 0 : i32
    return %c0_i32, %c0_i32_0 : i32, i32
  }
  func.func @transform_8(%arg0: i32) -> (i32, i32, i32) {
    %c0_i32 = arith.constant 0 : i32
    %c0_i32_0 = arith.constant 0 : i32
    %c0_i32_1 = arith.constant 0 : i32
    return %arg0, %c0_i32, %c0_i32_0 : i32, i32, i32
  }
  func.func @transform_9(%arg0: i32) -> (i32, i32, i32) {
    %c0_i32 = arith.constant 0 : i32
    %c0_i32_0 = arith.constant 0 : i32
    %c0_i32_1 = arith.constant 0 : i32
    return %arg0, %c0_i32, %c0_i32_0 : i32, i32, i32
  }
  func.func @transform_10(%arg0: i32) -> (i32, i32, i32) {
    %c0_i32 = arith.constant 0 : i32
    %c0_i32_0 = arith.constant 0 : i32
    %c0_i32_1 = arith.constant 0 : i32
    return %arg0, %c0_i32, %c0_i32_0 : i32, i32, i32
  }
}

module attributes {stable_mosaic.version = 11 : i64} {
  func.func @_stage2_kernel(%arg0: i32, %arg1: i32, %arg2: memref<1x16x64xbf16, #tpu.memory_space<vmem>>, %arg3: memref<1x16x32xf32, #tpu.memory_space<vmem>>, %arg4: memref<1x64xf32, #tpu.memory_space<vmem>>, %arg5: memref<1x64xf32, #tpu.memory_space<vmem>>, %arg6: memref<64x32xbf16, #tpu.memory_space<vmem>>, %arg7: memref<1x32xf32, #tpu.memory_space<vmem>>, %arg8: memref<1x16x32xf32, #tpu.memory_space<vmem>>) attributes {dimension_semantics = [#tpu.dimension_semantics<parallel>, #tpu.dimension_semantics<parallel>], iteration_bounds = array<i64: 2, 1>, scalar_prefetch = 0 : i64, scratch_operands = 0 : i64, tpu.core_type = #tpu.core_type<tc>, window_params = [{transform_indices = @transform_0, window_bounds = array<i64: 1, 16, 64>}, {transform_indices = @transform_1, window_bounds = array<i64: 1, 16, 32>}, {pipeline_mode = #tpu.pipeline_mode<synchronous>, transform_indices = @transform_2, window_bounds = array<i64: 1, 64>}, {pipeline_mode = #tpu.pipeline_mode<synchronous>, transform_indices = @transform_3, window_bounds = array<i64: 1, 64>}, {pipeline_mode = #tpu.pipeline_mode<synchronous>, transform_indices = @transform_4, window_bounds = array<i64: 64, 32>}, {pipeline_mode = #tpu.pipeline_mode<synchronous>, transform_indices = @transform_5, window_bounds = array<i64: 1, 32>}, {transform_indices = @transform_6, window_bounds = array<i64: 1, 16, 32>}]} {
    %c0 = arith.constant 0 : index
    %c0_0 = arith.constant 0 : index
    %c0_1 = arith.constant 0 : index
    %0 = vector.load %arg2[%c0, %c0_0, %c0_1] : memref<1x16x64xbf16, #tpu.memory_space<vmem>>, vector<1x16x64xbf16>
    %1 = vector.shape_cast %0 : vector<1x16x64xbf16> to vector<16x64xbf16>
    %2 = arith.extf %1 : vector<16x64xbf16> to vector<16x64xf32>
    %c0_2 = arith.constant 0 : index
    %c0_3 = arith.constant 0 : index
    %3 = vector.load %arg4[%c0_2, %c0_3] : memref<1x64xf32, #tpu.memory_space<vmem>>, vector<1x64xf32>
    %4 = vector.broadcast %3 : vector<1x64xf32> to vector<16x64xf32>
    %5 = arith.mulf %2, %4 : vector<16x64xf32>
    %c0_4 = arith.constant 0 : index
    %c0_5 = arith.constant 0 : index
    %6 = vector.load %arg5[%c0_4, %c0_5] : memref<1x64xf32, #tpu.memory_space<vmem>>, vector<1x64xf32>
    %7 = vector.broadcast %6 : vector<1x64xf32> to vector<16x64xf32>
    %8 = arith.addf %5, %7 : vector<16x64xf32>
    %9 = arith.negf %8 : vector<16x64xf32>
    %10 = math.exp %9 : vector<16x64xf32>
    %cst = arith.constant 1.000000e+00 : f32
    %11 = vector.broadcast %cst : f32 to vector<16x64xf32>
    %12 = arith.addf %11, %10 : vector<16x64xf32>
    %13 = arith.divf %11, %12 : vector<16x64xf32>
    %14 = arith.mulf %8, %13 : vector<16x64xf32>
    %15 = arith.truncf %14 : vector<16x64xf32> to vector<16x64xbf16>
    %c0_6 = arith.constant 0 : index
    %c0_7 = arith.constant 0 : index
    %16 = vector.load %arg6[%c0_6, %c0_7] : memref<64x32xbf16, #tpu.memory_space<vmem>>, vector<64x32xbf16>
    %cst_8 = arith.constant dense<0.000000e+00> : vector<16x32xf32>
    %17 = tpu.matmul %15, %16, %cst_8 {dimension_numbers = #tpu.dot_dimension_numbers<[1], [0], [0], [1], [0, 0, 1, 1], [], []>} : vector<16x64xbf16>, vector<64x32xbf16>, vector<16x32xf32> -> vector<16x32xf32>
    %c0_9 = arith.constant 0 : index
    %c0_10 = arith.constant 0 : index
    %18 = vector.load %arg7[%c0_9, %c0_10] : memref<1x32xf32, #tpu.memory_space<vmem>>, vector<1x32xf32>
    %19 = vector.broadcast %18 : vector<1x32xf32> to vector<16x32xf32>
    %20 = arith.addf %17, %19 : vector<16x32xf32>
    %c0_11 = arith.constant 0 : index
    %c0_12 = arith.constant 0 : index
    %c0_13 = arith.constant 0 : index
    %21 = vector.load %arg3[%c0_11, %c0_12, %c0_13] : memref<1x16x32xf32, #tpu.memory_space<vmem>>, vector<1x16x32xf32>
    %22 = vector.shape_cast %21 : vector<1x16x32xf32> to vector<16x32xf32>
    %23 = arith.addf %20, %22 : vector<16x32xf32>
    %c0_14 = arith.constant 0 : index
    %c0_15 = arith.constant 0 : index
    %c0_16 = arith.constant 0 : index
    %24 = vector.load %arg8[%c0_14, %c0_15, %c0_16] : memref<1x16x32xf32, #tpu.memory_space<vmem>>, vector<1x16x32xf32>
    %25 = vector.shape_cast %24 : vector<1x16x32xf32> to vector<16x32xf32>
    %26 = vector.shape_cast %23 : vector<16x32xf32> to vector<1x16x32xf32>
    tpu.vector_store %arg8[%c0_14, %c0_15, %c0_16], %26 {strides = array<i32>} : memref<1x16x32xf32, #tpu.memory_space<vmem>>, vector<1x16x32xf32>,
    return
  }
  func.func @transform_0(%arg0: i32, %arg1: i32) -> (i32, i32, i32) {
    %c0_i32 = arith.constant 0 : i32
    %c0_i32_0 = arith.constant 0 : i32
    return %arg0, %arg1, %c0_i32 : i32, i32, i32
  }
  func.func @transform_1(%arg0: i32, %arg1: i32) -> (i32, i32, i32) {
    %c0_i32 = arith.constant 0 : i32
    %c0_i32_0 = arith.constant 0 : i32
    return %arg0, %arg1, %c0_i32 : i32, i32, i32
  }
  func.func @transform_2(%arg0: i32, %arg1: i32) -> (i32, i32) {
    %c0_i32 = arith.constant 0 : i32
    %c0_i32_0 = arith.constant 0 : i32
    %c0_i32_1 = arith.constant 0 : i32
    return %c0_i32, %c0_i32_0 : i32, i32
  }
  func.func @transform_3(%arg0: i32, %arg1: i32) -> (i32, i32) {
    %c0_i32 = arith.constant 0 : i32
    %c0_i32_0 = arith.constant 0 : i32
    %c0_i32_1 = arith.constant 0 : i32
    return %c0_i32, %c0_i32_0 : i32, i32
  }
  func.func @transform_4(%arg0: i32, %arg1: i32) -> (i32, i32) {
    %c0_i32 = arith.constant 0 : i32
    %c0_i32_0 = arith.constant 0 : i32
    %c0_i32_1 = arith.constant 0 : i32
    return %c0_i32, %c0_i32_0 : i32, i32
  }
  func.func @transform_5(%arg0: i32, %arg1: i32) -> (i32, i32) {
    %c0_i32 = arith.constant 0 : i32
    %c0_i32_0 = arith.constant 0 : i32
    %c0_i32_1 = arith.constant 0 : i32
    return %c0_i32, %c0_i32_0 : i32, i32
  }
  func.func @transform_6(%arg0: i32, %arg1: i32) -> (i32, i32, i32) {
    %c0_i32 = arith.constant 0 : i32
    %c0_i32_0 = arith.constant 0 : i32
    return %arg0, %arg1, %c0_i32 : i32, i32, i32
  }
}

</mosaic_0001>

<llo_original>
// kernel: conv_module_forward.3
$region0: #{conv_module_forward.3}
  #allocation0 [shape = 'u32[]', space=smem, size = 0x4, offset = 0x4, fixed_abs, tag = 'smem constant byte address 0x4 - core index']
  #allocation1 [shape = 'u32[144,128]{1,0:T(1,128)}', space=vmem, size = 0x12000, scoped, tag = 'internal scratch']
  %s0 = inlined_call_operand.vmem [shape: bf16[2,16,64], index: 0, kind: input, shape index: {}]
  %s1 = inlined_call_operand.hbm [shape: f32[2,16,32], index: 1, kind: input, shape index: {}, may-alias: {1,6}]
  %s2 = inlined_call_operand.vmem [shape: f32[1,64], index: 2, kind: input, shape index: {}]
  %s3 = inlined_call_operand.vmem [shape: f32[1,64], index: 3, kind: input, shape index: {}]
  %s4 = inlined_call_operand.vmem [shape: bf16[64,32], index: 4, kind: input, shape index: {}]
  %s5 = inlined_call_operand.vmem [shape: f32[1,32], index: 5, kind: input, shape index: {}]
  %s6 = inlined_call_operand.hbm [shape: f32[2,16,32], index: 6, kind: output, shape index: {}, may-alias: {1,6}]
  %s7 = sld [smem:[#allocation0]]
  $region61: #{conv_module_forward.3} parent=0
    _
  %s9 = ssub.s32 1, %s7
  %s10 = scalar_select 0, %s9, %s7
  $region1: #{conv_module_forward.3} parent=0
    #allocation2 [shape = 'u8[16384]{0}', space=vmem, size = 0x4000, scoped, tag = 'input window, operand 1']
    #allocation3 [shape = 's32[2]{0}', space=sflag, size = 0x8, scoped, tag = 'scoped memory for conv_module_forward.3']
    #allocation4 [shape = 's32[2]{0}', space=sflag, size = 0x8, scoped, tag = 'scoped memory for conv_module_forward.3']
    #allocation5 [shape = 'u8[16384]{0}', space=vmem, size = 0x4000, scoped, tag = 'output window, operand 0']
    %11 = vsyncpa [#allocation3], 0
    %s12 = scalar_lea.sflag [#allocation3], 1
    %13 = vsyncpa %s12, 0
    %14 = vsyncpa [#allocation4], 0
    %s15 = scalar_lea.sflag [#allocation4], 1
    %16 = vsyncpa %s15, 0
    loop: start=0, step=1, limit=4
    $region2: #{conv_module_forward.3} parent=1 // loop_pre_header
      _
    $region3: #{conv_module_forward.3} parent=1 // loop_header
      %s18 = sphi 0, %s22
      %p19 = scmp.ge.s32.totalorder %s18, 4
      %s25 = sphi 0, %s37
      %s26 = sphi 0, %s33
      %s27 = sphi 0, %s25
      %s28 = sphi 0, %s26
      %s29 = sphi 0, %s27
      %s30 = sphi 0, %s28
      %s42 = sphi 0, %s44
      %s45 = sphi 0, %s42
      %s46 = sphi 0, %s45
      %s62 = sphi 0, %s46
      %s70 = sphi 0, %s72
      %s73 = sphi 0, %s70
      %s74 = sphi 0, %s73
      %s90 = sphi 0, %s74
      %s94 = sphi 0, %s94
      %s96 = sphi 0, %s94
      %s97 = sphi 0, %s96
      %s111 = sphi 0, %s97
      %s115 = sphi 0, %s115
      %s117 = sphi 0, %s115
      %s118 = sphi 0, %s117
      %s132 = sphi 0, %s118
      %s136 = sphi 0, %s136
      %s138 = sphi 0, %s136
      %s139 = sphi 0, %s138
      %s153 = sphi 0, %s139
      %s157 = sphi 0, %s157
      %s159 = sphi 0, %s157
      %s160 = sphi 0, %s159
      %s174 = sphi 0, %s160
      %s182 = sphi 0, %s184
      %s185 = sphi 0, %s182
      %s186 = sphi 0, %s185
      %s202 = sphi 0, %s186
    $region4: #{conv_module_forward.3} parent=1 // loop_header_branch
      %21 = sbr.rel (%p19) target = $region8
    $region5: #{conv_module_forward.3} parent=1 // loop_body
      %s23 = ssub.s32 %s18, 1
      %s24 = ssub.s32 %s18, 2
      %s31 = sadd.s32 1, %s26
      %p32 = scmp.ge.s32.totalorder %s31, 1
      %s33 = scalar_select %p32, 0, %s31
      %s34 = sadd.s32 1, %s25
      %s35 = scalar_select %p32, %s34, %s25
      %p36 = scmp.ge.s32.totalorder %s35, 2
      %s37 = scalar_select %p36, 0, %s35
      %s38 = ssub.s32 %s25, %s37
      %s39 = ssub.s32 %s26, %s33
      %s40 = sor.u32 %s38, %s39
      %p41 = scmp.eq.s32.totalorder %s40, 0
      %s43 = sadd.s32 %s42, 1
      %s44 = scalar_select %p41, %s42, %s43
      %p47 = pneg %p41
      %p48 = scmp.eq.s32.totalorder %s18, 1
      %p49 = por %p47, %p48
      %p50 = scmp.ne.s32.totalorder %s42, %s45
      %p51 = scmp.eq.s32.totalorder %s18, 0
      %p52 = por %p50, %p51
      %p53 = scmp.ne.s32.totalorder %s42, %s45
      %p54 = scmp.eq.s32.totalorder %s23, 1
      %p55 = por %p53, %p54
      %p56 = scmp.ne.s32.totalorder %s45, %s46
      %p57 = scmp.eq.s32.totalorder %s23, 0
      %p58 = por %p56, %p57
      %p59 = scmp.ne.s32.totalorder %s45, %s46
      %p60 = scmp.eq.s32.totalorder %s24, 1
      %p61 = por %p59, %p60
      %p63 = scmp.ne.s32.totalorder %s46, %s62
      %p64 = scmp.eq.s32.totalorder %s24, 0
      %p65 = por %p63, %p64
      %s66 = ssub.s32 %s25, %s37
      %s67 = ssub.s32 %s26, %s33
      %s68 = sor.u32 %s66, %s67
      %p69 = scmp.eq.s32.totalorder %s68, 0
      %s71 = sadd.s32 %s70, 1
      %s72 = scalar_select %p69, %s70, %s71
      %p75 = pneg %p69
      %p76 = scmp.eq.s32.totalorder %s18, 1
      %p77 = por %p75, %p76
      %p78 = scmp.ne.s32.totalorder %s70, %s73
      %p79 = scmp.eq.s32.totalorder %s18, 0
      %p80 = por %p78, %p79
      %p81 = scmp.ne.s32.totalorder %s70, %s73
      %p82 = scmp.eq.s32.totalorder %s23, 1
      %p83 = por %p81, %p82
      %p84 = scmp.ne.s32.totalorder %s73, %s74
      %p85 = scmp.eq.s32.totalorder %s23, 0
      %p86 = por %p84, %p85
      %p87 = scmp.ne.s32.totalorder %s73, %s74
      %p88 = scmp.eq.s32.totalorder %s24, 1
      %p89 = por %p87, %p88
      %p91 = scmp.ne.s32.totalorder %s74, %s90
      %p92 = scmp.eq.s32.totalorder %s24, 0
      %p93 = por %p91, %p92
      %s95 = sadd.s32 %s94, 1
      %p98 = scmp.eq.s32.totalorder %s18, 1
      %p99 = scmp.ne.s32.totalorder %s94, %s96
      %p100 = scmp.eq.s32.totalorder %s18, 0
      %p101 = por %p99, %p100
      %p102 = scmp.ne.s32.totalorder %s94, %s96
      %p103 = scmp.eq.s32.totalorder %s23, 1
      %p104 = por %p102, %p103
      %p105 = scmp.ne.s32.totalorder %s96, %s97
      %p106 = scmp.eq.s32.totalorder %s23, 0
      %p107 = por %p105, %p106
      %p108 = scmp.ne.s32.totalorder %s96, %s97
      %p109 = scmp.eq.s32.totalorder %s24, 1
      %p110 = por %p108, %p109
      %p112 = scmp.ne.s32.totalorder %s97, %s111
      %p113 = scmp.eq.s32.totalorder %s24, 0
      %p114 = por %p112, %p113
      %s116 = sadd.s32 %s115, 1
      %p119 = scmp.eq.s32.totalorder %s18, 1
      %p120 = scmp.ne.s32.totalorder %s115, %s117
      %p121 = scmp.eq.s32.totalorder %s18, 0
      %p122 = por %p120, %p121
      %p123 = scmp.ne.s32.totalorder %s115, %s117
      %p124 = scmp.eq.s32.totalorder %s23, 1
      %p125 = por %p123, %p124
      %p126 = scmp.ne.s32.totalorder %s117, %s118
      %p127 = scmp.eq.s32.totalorder %s23, 0
      %p128 = por %p126, %p127
      %p129 = scmp.ne.s32.totalorder %s117, %s118
      %p130 = scmp.eq.s32.totalorder %s24, 1
      %p131 = por %p129, %p130
      %p133 = scmp.ne.s32.totalorder %s118, %s132
      %p134 = scmp.eq.s32.totalorder %s24, 0
      %p135 = por %p133, %p134
      %s137 = sadd.s32 %s136, 1
      %p140 = scmp.eq.s32.totalorder %s18, 1
      %p141 = scmp.ne.s32.totalorder %s136, %s138
      %p142 = scmp.eq.s32.totalorder %s18, 0
      %p143 = por %p141, %p142
      %p144 = scmp.ne.s32.totalorder %s136, %s138
      %p145 = scmp.eq.s32.totalorder %s23, 1
      %p146 = por %p144, %p145
      %p147 = scmp.ne.s32.totalorder %s138, %s139
      %p148 = scmp.eq.s32.totalorder %s23, 0
      %p149 = por %p147, %p148
      %p150 = scmp.ne.s32.totalorder %s138, %s139
      %p151 = scmp.eq.s32.totalorder %s24, 1
      %p152 = por %p150, %p151
      %p154 = scmp.ne.s32.totalorder %s139, %s153
      %p155 = scmp.eq.s32.totalorder %s24, 0
      %p156 = por %p154, %p155
      %s158 = sadd.s32 %s157, 1
      %p161 = scmp.eq.s32.totalorder %s18, 1
      %p162 = scmp.ne.s32.totalorder %s157, %s159
      %p163 = scmp.eq.s32.totalorder %s18, 0
      %p164 = por %p162, %p163
      %p165 = scmp.ne.s32.totalorder %s157, %s159
      %p166 = scmp.eq.s32.totalorder %s23, 1
      %p167 = por %p165, %p166
      %p168 = scmp.ne.s32.totalorder %s159, %s160
      %p169 = scmp.eq.s32.totalorder %s23, 0
      %p170 = por %p168, %p169
      %p171 = scmp.ne.s32.totalorder %s159, %s160
      %p172 = scmp.eq.s32.totalorder %s24, 1
      %p173 = por %p171, %p172
      %p175 = scmp.ne.s32.totalorder %s160, %s174
      %p176 = scmp.eq.s32.totalorder %s24, 0
      %p177 = por %p175, %p176
      %s178 = ssub.s32 %s25, %s37
      %s179 = ssub.s32 %s26, %s33
      %s180 = sor.u32 %s178, %s179
      %p181 = scmp.eq.s32.totalorder %s180, 0
      %s183 = sadd.s32 %s182, 1
      %s184 = scalar_select %p181, %s182, %s183
      %p187 = pneg %p181
      %p188 = scmp.eq.s32.totalorder %s18, 1
      %p189 = por %p187, %p188
      %p190 = scmp.ne.s32.totalorder %s182, %s185
      %p191 = scmp.eq.s32.totalorder %s18, 0
      %p192 = por %p190, %p191
      %p193 = scmp.ne.s32.totalorder %s182, %s185
      %p194 = scmp.eq.s32.totalorder %s23, 1
      %p195 = por %p193, %p194
      %p196 = scmp.ne.s32.totalorder %s185, %s186
      %p197 = scmp.eq.s32.totalorder %s23, 0
      %p198 = por %p196, %p197
      %p199 = scmp.ne.s32.totalorder %s185, %s186
      %p200 = scmp.eq.s32.totalorder %s24, 1
      %p201 = por %p199, %p200
      %p203 = scmp.ne.s32.totalorder %s186, %s202
      %p204 = scmp.eq.s32.totalorder %s24, 0
      %p205 = por %p203, %p204
      %p206 = scmp.le.s32.totalorder 1, %s18
      %p207 = scmp.lt.s32.totalorder %s18, 3
      %p208 = pnand %p206, %p207
      %p209 = pneg %p208
      // Predicated region
      $region9: #{conv_module_forward.3} parent=5 // pred_check
        _
      $region10: #{conv_module_forward.3} parent=5 // pred_check_branch
        %211 = sbr.rel (%p208) target = $region12
      $region11: #{conv_module_forward.3} parent=5 // pred_region
        %s212 = ssub.s32 %s18, 1
        // Predicated region
        $region13: #{conv_module_forward.3} parent=11 // pred_check
          %p213 = pneg %p107
        $region14: #{conv_module_forward.3} parent=11 // pred_check_branch
          %215 = sbr.rel (%p213) target = $region16
        $region15: #{conv_module_forward.3} parent=11 // pred_region
          _
        $region16: #{conv_module_forward.3} parent=11 // pred_fallthru
          _
        // Predicated region
        $region17: #{conv_module_forward.3} parent=11 // pred_check
          %p216 = pneg %p128
        $region18: #{conv_module_forward.3} parent=11 // pred_check_branch
          %218 = sbr.rel (%p216) target = $region20
        $region19: #{conv_module_forward.3} parent=11 // pred_region
          _
        $region20: #{conv_module_forward.3} parent=11 // pred_fallthru
          _
        // Predicated region
        $region21: #{conv_module_forward.3} parent=11 // pred_check
          %p219 = pneg %p149
        $region22: #{conv_module_forward.3} parent=11 // pred_check_branch
          %221 = sbr.rel (%p219) target = $region24
        $region23: #{conv_module_forward.3} parent=11 // pred_region
          _
        $region24: #{conv_module_forward.3} parent=11 // pred_fallthru
          _
        // Predicated region
        $region25: #{conv_module_forward.3} parent=11 // pred_check
          %p222 = pneg %p170
        $region26: #{conv_module_forward.3} parent=11 // pred_check_branch
          %224 = sbr.rel (%p222) target = $region28
        $region27: #{conv_module_forward.3} parent=11 // pred_region
          _
        $region28: #{conv_module_forward.3} parent=11 // pred_fallthru
          _
      $region12: #{conv_module_forward.3} parent=5 // pred_fallthru
        _
      %p225 = scmp.lt.s32.totalorder %s18, 2
      // Predicated region
      $region29: #{conv_module_forward.3} parent=5 // pred_check
        %p226 = pneg %p225
      $region30: #{conv_module_forward.3} parent=5 // pred_check_branch
        %228 = sbr.rel (%p226) target = $region32
      $region31: #{conv_module_forward.3} parent=5 // pred_region
        // Predicated region
        $region33: #{conv_module_forward.3} parent=31 // pred_check
          %p229 = pneg %p52
        $region34: #{conv_module_forward.3} parent=31 // pred_check_branch
          %231 = sbr.rel (%p229) target = $region36
        $region35: #{conv_module_forward.3} parent=31 // pred_region
          %s232 = smul.u32 2, %s26
          %p233 = scmp.lt.s32.totalorder %s25, 1
          %s234 = scalar_select %p233, %s25, 1
          %p235 = scmp.lt.s32.totalorder %s232, 1
          %s236 = scalar_select %p235, %s232, 1
          %s237 = smul.addr %s234, 2
          %s238 = sadd.s32 %s236, %s237
          %s239 = smul.addr %s238, 4
          %s240 = scalar_lea.vmem %s0, %s239
          %s241 = smul.u32 2, %s26
        $region36: #{conv_module_forward.3} parent=31 // pred_fallthru
          _
        // Predicated region
        $region37: #{conv_module_forward.3} parent=31 // pred_check
          %p242 = pneg %p80
        $region38: #{conv_module_forward.3} parent=31 // pred_check_branch
          %244 = sbr.rel (%p242) target = $region40
        $region39: #{conv_module_forward.3} parent=31 // pred_region
          %s245 = sand.u32 %s70, 1
          %s246 = scalar_lea.sflag [#allocation3], %s245
          %s247 = sand.u32 %s70, 1
          %s248 = smul.addr %s247, 16
          %s249 = scalar_lea.vmem [#allocation2], %s248
          %s250 = smul.u32 2, %s26
          %s252 = ssub.s32 256, 256
          %253 = vsyncadd %s246, %s252
          %s254 = smul.addr %s25, 2
          %s255 = sadd.s32 %s250, %s254
          %s256 = smul.addr %s255, 128
          %s257 = scalar_lea.hbm %s1, %s256
          %s258 = sshll.u32 %s249, 4
          %s259 = int_to_ptr.vmem [resolvable:$true] %s258
          %264 = dma.hbm_to_vmem [thread:$0]  %s257, 256, %s259, %s246, 128, 128, 8
        $region40: #{conv_module_forward.3} parent=31 // pred_fallthru
          _
      $region32: #{conv_module_forward.3} parent=5 // pred_fallthru
        _
      %p265 = scmp.le.s32.totalorder 1, %s18
      %p266 = scmp.lt.s32.totalorder %s18, 3
      %p267 = pnand %p265, %p266
      %p268 = pneg %p267
      // Predicated region
      $region41: #{conv_module_forward.3} parent=5 // pred_check
        _
      $region42: #{conv_module_forward.3} parent=5 // pred_check_branch
        %270 = sbr.rel (%p267) target = $region44
      $region43: #{conv_module_forward.3} parent=5 // pred_region
        %s271 = ssub.s32 %s18, 1
        %s272 = sand.u32 %s73, 1
        %s273 = scalar_lea.sflag [#allocation3], %s272
        %s274 = sand.u32 %s73, 1
        %s275 = smul.addr %s274, 16
        %s276 = scalar_lea.vmem [#allocation2], %s275
        // Predicated region
        $region45: #{conv_module_forward.3} parent=43 // pred_check
          %p277 = pneg %p86
        $region46: #{conv_module_forward.3} parent=43 // pred_check_branch
          %279 = sbr.rel (%p277) target = $region48
        $region47: #{conv_module_forward.3} parent=43 // pred_region
          %280 = dma.done %s273, 256
        $region48: #{conv_module_forward.3} parent=43 // pred_fallthru
          _
        %s281 = smul.u32 2, %s28
        %p282 = scmp.lt.s32.totalorder %s27, 1
        %s283 = scalar_select %p282, %s27, 1
        %p284 = scmp.lt.s32.totalorder %s281, 1
        %s285 = scalar_select %p284, %s281, 1
        %s286 = smul.addr %s283, 2
        %s287 = sadd.s32 %s285, %s286
        %s288 = smul.addr %s287, 4
        %s289 = scalar_lea.vmem %s0, %s288
        %p290 = pneg %p58
        %p291 = pneg %p55
        %s292 = sand.u32 %s73, 1
        %s293 = scalar_lea.sflag [#allocation3], %s292
        %s294 = sand.u32 %s73, 1
        %s295 = smul.addr %s294, 16
        %s296 = scalar_lea.vmem [#allocation2], %s295
        %p297 = pneg %p86
        %p298 = pneg %p83
        %p299 = pneg %p107
        %p300 = pneg %p104
        %p301 = pneg %p128
        %p302 = pneg %p125
        %p303 = pneg %p149
        %p304 = pneg %p146
        %p305 = pneg %p170
        %p306 = pneg %p167
        %p307 = pneg %p198
        %p308 = pneg %p195
        %s309 = sand.u32 %s185, 1
        %s310 = scalar_lea.sflag [#allocation4], %s309
        %s311 = sand.u32 %s185, 1
        %s312 = smul.addr %s311, 16
        %s313 = scalar_lea.vmem [#allocation5], %s312
        %s314 = smul.u32 2, %s28
        %p315 = scmp.lt.s32.totalorder %s27, 1
        %s316 = scalar_select %p315, %s27, 1
        %p317 = scmp.lt.s32.totalorder %s314, 1
        %s318 = scalar_select %p317, %s314, 1
        %s319 = smul.addr %s316, 2
        %s320 = sadd.s32 %s318, %s319
        %s321 = smul.addr %s320, 4
        %s322 = scalar_lea.vmem %s0, %s321
        %s323 = smul.u32 2, %s28
        %s324 = smul.u32 2, %s28
        %s325 = smul.u32 2, %s28
        %v327 = vld [vmem:[%s322] sm:$0xf]
        %v328 = vld [vmem:[%s322 + $0x4] sm:$0xf]
        %v329 = vunpack.c.l.bf16 %v327
        %v330 = vunpack.c.l.bf16 %v328
        %v331 = vld [vmem:[%s2] sm:$0x1]
        %v333 = vlaneseq
        %v334 = vshrl.u32 %v333, 7
        %v335 = vsub.s32 0, %v334
        %v336 = vrot.slane %v331, %v335
        %v338 = vmul.f32 %v329, %v336
        %v339 = vmul.f32 %v330, %v336
        %v340 = vld [vmem:[%s3] sm:$0x1]
        %v342 = vlaneseq
        %v343 = vshrl.u32 %v342, 7
        %v344 = vsub.s32 0, %v343
        %v345 = vrot.slane %v340, %v344
        %v347 = vadd.f32 %v338, %v345
        %v348 = vadd.f32 %v339, %v345
        %v349 = vxor.u32 %v347, 2147483648
        %v350 = vxor.u32 %v348, 2147483648
        %v351 = vmul.f32 %v349, 1.442695
        %v352 = vpow.pop %v351
        %v353 = vmul.f32 %v350, 1.442695
        %v354 = vpow.pop %v353
        %v355 = vadd.f32 %v352, 1.0
        %v356 = vadd.f32 %v354, 1.0
        %v357 = vrcp.pop %v355
        %v358 = vmul.f32 1.0, %v357
        %v359 = vrcp.pop %v356
        %v360 = vmul.f32 1.0, %v359
        %v361 = vmul.f32 %v347, %v358
        %v362 = vmul.f32 %v348, %v360
        %v363 = vpack.c.bf16 %v362, %v361
        %v364 = vld [vmem:[%s4] sm:$0xf]
        %v365 = vld [vmem:[%s4 + $0x4] sm:$0xf]
        %v366 = vld [vmem:[%s4 + $0x8] sm:$0xf]
        %v367 = vld [vmem:[%s4 + $0xc] sm:$0xf]
        %v368 = vld [vmem:[%s4 + $0x10] sm:$0xf]
        %v369 = vld [vmem:[%s4 + $0x14] sm:$0xf]
        %v370 = vld [vmem:[%s4 + $0x18] sm:$0xf]
        %v371 = vld [vmem:[%s4 + $0x1c] sm:$0xf]
        %v372 = vld [vmem:[%s5] sm:$0x1]
        %v374 = vlaneseq
        %v375 = vshrl.u32 %v374, 7
        %v376 = vsub.s32 0, %v375
        %v377 = vrot.slane %v372, %v376
        %v387 = vunpack.c.l.b16 %v364
        %v388 = vunpack.c.l.b16 %v365
        %v389 = vunpack.c.l.b16 %v366
        %v390 = vunpack.c.l.b16 %v367
        %v391 = vunpack.c.l.b16 %v368
        %v392 = vunpack.c.l.b16 %v369
        %v393 = vunpack.c.l.b16 %v370
        %v394 = vunpack.c.l.b16 %v371
        %v395 = vpack.c.b16 %v388, %v387
        %v396 = vpack.c.b16 %v390, %v389
        %v397 = vpack.c.b16 %v392, %v391
        %v398 = vpack.c.b16 %v394, %v393
        %vm403 = vcmask 523264
        %v405 = vsel %vm403, %v363, 0
        %407 = vmatprep.subr.bf16.mxu0 0
        %408 = vmatpush1.bf16.msra.mxu0 %v395
        %409 = vmatprep.subr.bf16.mxu0 0
        %410 = vmatpush1.bf16.msra.mxu0 %v396
        %411 = vmatprep.subr.bf16.mxu0 0
        %412 = vmatpush1.bf16.msra.mxu0 %v397
        %413 = vmatprep.subr.bf16.mxu0 0
        %414 = vmatpush1.bf16.msra.mxu0 %v398
        %415 = vmatprep.subr.bf16.mxu0 0
        %416 = vmatpush1.bf16.msra.mxu0 0
        %417 = vmatprep.subr.bf16.mxu0 0
        %418 = vmatpush1.bf16.msra.mxu0 0
        %419 = vmatprep.subr.bf16.mxu0 0
        %420 = vmatpush1.bf16.msra.mxu0 0
        %421 = vmatprep.subr.bf16.mxu0 0
        %422 = vmatpush1.bf16.msra.mxu0 0
        %423 = vmatprep.subr.bf16.mxu0 0
        %424 = vmatpush1.bf16.msra.mxu0 0
        %425 = vmatprep.subr.bf16.mxu0 0
        %426 = vmatpush1.bf16.msra.mxu0 0
        %427 = vmatprep.subr.bf16.mxu0 0
        %428 = vmatpush1.bf16.msra.mxu0 0
        %429 = vmatprep.subr.bf16.mxu0 0
        %430 = vmatpush1.bf16.msra.mxu0 0
        %431 = vmatprep.subr.bf16.mxu0 0
        %432 = vmatpush1.bf16.msra.mxu0 0
        %433 = vmatprep.subr.bf16.mxu0 0
        %434 = vmatpush1.bf16.msra.mxu0 0
        %435 = vmatprep.subr.bf16.mxu0 0
        %436 = vmatpush1.bf16.msra.mxu0 0
        %437 = vmatprep.subr.bf16.mxu0 0
        %438 = vmatpush1.bf16.msra.mxu0 0
        %439 = vmatprep.mubr.bf16.mxu0 0
        %440 = vmatmul.mubr.bf16.gmra.mrb[0].mxu0 %v405
        %v441 = vpop.f32.mrb[0].mxu0
        %v442 = vadd.f32 %v377, %v441
        %v443 = vpop.f32.mrb[0].mxu0
        %v444 = vpop.f32.mrb[0].mxu0
        %v445 = vadd.f32 %v377, %v444
        %v446 = vpop.f32.mrb[0].mxu0
        %447 = vdwg.mxu0
        %v448 = vld [vmem:[%s276] sm:$0xff]
        %v449 = vld [vmem:[%s276 + $0x8] sm:$0xff]
        %v450 = vadd.f32 %v442, %v448
        %v451 = vadd.f32 %v445, %v449
        %vm452 = vcmask 261120
        %453 = vst.msk [vmem:[%s313] sm:$0xff] %vm452, %v450
        %454 = vst.msk [vmem:[%s313 + $0x8] sm:$0xff] %vm452, %v451
        %s455 = sand.u32 %s185, 1
        %s456 = scalar_lea.sflag [#allocation4], %s455
        %s457 = sand.u32 %s185, 1
        %s458 = smul.addr %s457, 16
        %s459 = scalar_lea.vmem [#allocation5], %s458
        // Predicated region
        $region49: #{conv_module_forward.3} parent=43 // pred_check
          %p460 = pneg %p195
        $region50: #{conv_module_forward.3} parent=43 // pred_check_branch
          %462 = sbr.rel (%p460) target = $region52
        $region51: #{conv_module_forward.3} parent=43 // pred_region
          %s463 = smul.u32 2, %s28
          %s465 = ssub.s32 256, 256
          %466 = vsyncadd %s456, %s465
          %s467 = smul.addr %s27, 2
          %s468 = sadd.s32 %s463, %s467
          %s469 = smul.addr %s468, 128
          %s470 = scalar_lea.hbm %s6, %s469
          %s471 = sshll.u32 %s459, 4
          %s472 = int_to_ptr.vmem [resolvable:$true] %s471
          %477 = dma.vmem_to_hbm [thread:$0]  %s472, 256, %s470, %s456, 128, 128, 8
        $region52: #{conv_module_forward.3} parent=43 // pred_fallthru
          _
      $region44: #{conv_module_forward.3} parent=5 // pred_fallthru
        _
      %p478 = scmp.le.s32.totalorder 2, %s18
      // Predicated region
      $region53: #{conv_module_forward.3} parent=5 // pred_check
        %p479 = pneg %p478
      $region54: #{conv_module_forward.3} parent=5 // pred_check_branch
        %481 = sbr.rel (%p479) target = $region56
      $region55: #{conv_module_forward.3} parent=5 // pred_region
        %s482 = ssub.s32 %s18, 2
        // Predicated region
        $region57: #{conv_module_forward.3} parent=55 // pred_check
          %p483 = pneg %p201
        $region58: #{conv_module_forward.3} parent=55 // pred_check_branch
          %485 = sbr.rel (%p483) target = $region60
        $region59: #{conv_module_forward.3} parent=55 // pred_region
          %s486 = sand.u32 %s186, 1
          %s487 = scalar_lea.sflag [#allocation4], %s486
          %s488 = sand.u32 %s186, 1
          %s489 = smul.addr %s488, 16
          %s490 = scalar_lea.vmem [#allocation5], %s489
          %491 = dma.done %s487, 256
        $region60: #{conv_module_forward.3} parent=55 // pred_fallthru
          _
      $region56: #{conv_module_forward.3} parent=5 // pred_fallthru
        _
    $region6: #{conv_module_forward.3} parent=1 // loop_footer
      %s22 = sadd.s32 1, %s18
    $region7: #{conv_module_forward.3} parent=1 // loop_footer_branch
      %17 = sbr.rel target = $region3
    $region8: #{conv_module_forward.3} parent=1 // loop_exit
      _
    %492 = vsyncpa [#allocation3], 1
    %s493 = scalar_lea.sflag [#allocation3], 1
    %494 = vsyncpa %s493, 1
    %495 = vsyncpa [#allocation4], 1
    %s496 = scalar_lea.sflag [#allocation4], 1
    %497 = vsyncpa %s496, 1

// kernel: conv_module_forward.2
$region0: #{conv_module_forward.2}
  #allocation0 [shape = 'u32[]', space=smem, size = 0x4, offset = 0x4, fixed_abs, tag = 'smem constant byte address 0x4 - core index']
  #allocation1 [shape = 'u32[144,128]{1,0:T(1,128)}', space=vmem, size = 0x12000, scoped, tag = 'internal scratch']
  #allocation2 [shape = 'bf16[35,64]{1,0:T(8,128)(2,1)}', space=vmem, size = 0x2800, scoped, tag = 'scratch operand']
  %s0 = inlined_call_operand.vmem [shape: f32[2,16,32], index: 0, kind: input, shape index: {}]
  %s1 = inlined_call_operand.vmem [shape: f32[1,32], index: 1, kind: input, shape index: {}]
  %s2 = inlined_call_operand.vmem [shape: f32[1,32], index: 2, kind: input, shape index: {}]
  %s3 = inlined_call_operand.vmem [shape: bf16[32,64], index: 3, kind: input, shape index: {}]
  %s4 = inlined_call_operand.vmem [shape: f32[1,64], index: 4, kind: input, shape index: {}]
  %s5 = inlined_call_operand.vmem [shape: bf16[32,64], index: 5, kind: input, shape index: {}]
  %s6 = inlined_call_operand.vmem [shape: f32[1,64], index: 6, kind: input, shape index: {}]
  %s7 = inlined_call_operand.vmem [shape: f32[7,64], index: 7, kind: input, shape index: {}]
  %s8 = inlined_call_operand.vmem [shape: bf16[2,16,64], index: 8, kind: output, shape index: {0}]
  %s9 = inlined_call_operand.vmem [shape: f32[2,1,64], index: 9, kind: output, shape index: {1}]
  %s10 = inlined_call_operand.vmem [shape: f32[2,1,64], index: 10, kind: output, shape index: {2}]
  %11 = xla_tuple %s8, %s9, %s10
  %s12 = sld [smem:[#allocation0]]
  $region81: #{conv_module_forward.2} parent=0
    _
  %s14 = ssub.s32 1, %s12
  %s15 = scalar_select 0, %s14, %s12
  loop: start=0, step=1, limit=4
  $region2: #{conv_module_forward.2} parent=0 // loop_pre_header
    _
  $region3: #{conv_module_forward.2} parent=0 // loop_header
    %s17 = sphi 0, %s21
    %p18 = scmp.ge.s32.totalorder %s17, 4
    %s27 = sphi 0, %s29
    %s30 = sphi 0, %s27
    %s31 = sphi 0, %s30
    %s47 = sphi 0, %s31
    %s51 = sphi 0, %s51
    %s53 = sphi 0, %s51
    %s54 = sphi 0, %s53
    %s68 = sphi 0, %s54
    %s72 = sphi 0, %s72
    %s74 = sphi 0, %s72
    %s75 = sphi 0, %s74
    %s89 = sphi 0, %s75
    %s93 = sphi 0, %s93
    %s95 = sphi 0, %s93
    %s96 = sphi 0, %s95
    %s110 = sphi 0, %s96
    %s114 = sphi 0, %s114
    %s116 = sphi 0, %s114
    %s117 = sphi 0, %s116
    %s131 = sphi 0, %s117
    %s135 = sphi 0, %s135
    %s137 = sphi 0, %s135
    %s138 = sphi 0, %s137
    %s152 = sphi 0, %s138
    %s156 = sphi 0, %s156
    %s158 = sphi 0, %s156
    %s159 = sphi 0, %s158
    %s173 = sphi 0, %s159
    %s177 = sphi 0, %s177
    %s179 = sphi 0, %s177
    %s180 = sphi 0, %s179
    %s194 = sphi 0, %s180
    %s200 = sphi 0, %s202
    %s203 = sphi 0, %s200
    %s204 = sphi 0, %s203
    %s220 = sphi 0, %s204
    %s226 = sphi 0, %s228
    %s229 = sphi 0, %s226
    %s230 = sphi 0, %s229
    %s246 = sphi 0, %s230
    %s252 = sphi 0, %s254
    %s255 = sphi 0, %s252
    %s256 = sphi 0, %s255
    %s272 = sphi 0, %s256
  $region4: #{conv_module_forward.2} parent=0 // loop_header_branch
    %20 = sbr.rel (%p18) target = $region8
  $region5: #{conv_module_forward.2} parent=0 // loop_body
    %s22 = ssub.s32 %s17, 1
    %s23 = ssub.s32 %s17, 2
    %s24 = sadd.s32 %s17, 1
    %s25 = ssub.s32 %s17, %s24
    %p26 = scmp.eq.s32.totalorder %s25, 0
    %s28 = sadd.s32 %s27, 1
    %s29 = scalar_select %p26, %s27, %s28
    %p32 = pneg %p26
    %p33 = scmp.eq.s32.totalorder %s17, 1
    %p34 = por %p32, %p33
    %p35 = scmp.ne.s32.totalorder %s27, %s30
    %p36 = scmp.eq.s32.totalorder %s17, 0
    %p37 = por %p35, %p36
    %p38 = scmp.ne.s32.totalorder %s27, %s30
    %p39 = scmp.eq.s32.totalorder %s22, 1
    %p40 = por %p38, %p39
    %p41 = scmp.ne.s32.totalorder %s30, %s31
    %p42 = scmp.eq.s32.totalorder %s22, 0
    %p43 = por %p41, %p42
    %p44 = scmp.ne.s32.totalorder %s30, %s31
    %p45 = scmp.eq.s32.totalorder %s23, 1
    %p46 = por %p44, %p45
    %p48 = scmp.ne.s32.totalorder %s31, %s47
    %p49 = scmp.eq.s32.totalorder %s23, 0
    %p50 = por %p48, %p49
    %s52 = sadd.s32 %s51, 1
    %p55 = scmp.eq.s32.totalorder %s17, 1
    %p56 = scmp.ne.s32.totalorder %s51, %s53
    %p57 = scmp.eq.s32.totalorder %s17, 0
    %p58 = por %p56, %p57
    %p59 = scmp.ne.s32.totalorder %s51, %s53
    %p60 = scmp.eq.s32.totalorder %s22, 1
    %p61 = por %p59, %p60
    %p62 = scmp.ne.s32.totalorder %s53, %s54
    %p63 = scmp.eq.s32.totalorder %s22, 0
    %p64 = por %p62, %p63
    %p65 = scmp.ne.s32.totalorder %s53, %s54
    %p66 = scmp.eq.s32.totalorder %s23, 1
    %p67 = por %p65, %p66
    %p69 = scmp.ne.s32.totalorder %s54, %s68
    %p70 = scmp.eq.s32.totalorder %s23, 0
    %p71 = por %p69, %p70
    %s73 = sadd.s32 %s72, 1
    %p76 = scmp.eq.s32.totalorder %s17, 1
    %p77 = scmp.ne.s32.totalorder %s72, %s74
    %p78 = scmp.eq.s32.totalorder %s17, 0
    %p79 = por %p77, %p78
    %p80 = scmp.ne.s32.totalorder %s72, %s74
    %p81 = scmp.eq.s32.totalorder %s22, 1
    %p82 = por %p80, %p81
    %p83 = scmp.ne.s32.totalorder %s74, %s75
    %p84 = scmp.eq.s32.totalorder %s22, 0
    %p85 = por %p83, %p84
    %p86 = scmp.ne.s32.totalorder %s74, %s75
    %p87 = scmp.eq.s32.totalorder %s23, 1
    %p88 = por %p86, %p87
    %p90 = scmp.ne.s32.totalorder %s75, %s89
    %p91 = scmp.eq.s32.totalorder %s23, 0
    %p92 = por %p90, %p91
    %s94 = sadd.s32 %s93, 1
    %p97 = scmp.eq.s32.totalorder %s17, 1
    %p98 = scmp.ne.s32.totalorder %s93, %s95
    %p99 = scmp.eq.s32.totalorder %s17, 0
    %p100 = por %p98, %p99
    %p101 = scmp.ne.s32.totalorder %s93, %s95
    %p102 = scmp.eq.s32.totalorder %s22, 1
    %p103 = por %p101, %p102
    %p104 = scmp.ne.s32.totalorder %s95, %s96
    %p105 = scmp.eq.s32.totalorder %s22, 0
    %p106 = por %p104, %p105
    %p107 = scmp.ne.s32.totalorder %s95, %s96
    %p108 = scmp.eq.s32.totalorder %s23, 1
    %p109 = por %p107, %p108
    %p111 = scmp.ne.s32.totalorder %s96, %s110
    %p112 = scmp.eq.s32.totalorder %s23, 0
    %p113 = por %p111, %p112
    %s115 = sadd.s32 %s114, 1
    %p118 = scmp.eq.s32.totalorder %s17, 1
    %p119 = scmp.ne.s32.totalorder %s114, %s116
    %p120 = scmp.eq.s32.totalorder %s17, 0
    %p121 = por %p119, %p120
    %p122 = scmp.ne.s32.totalorder %s114, %s116
    %p123 = scmp.eq.s32.totalorder %s22, 1
    %p124 = por %p122, %p123
    %p125 = scmp.ne.s32.totalorder %s116, %s117
    %p126 = scmp.eq.s32.totalorder %s22, 0
    %p127 = por %p125, %p126
    %p128 = scmp.ne.s32.totalorder %s116, %s117
    %p129 = scmp.eq.s32.totalorder %s23, 1
    %p130 = por %p128, %p129
    %p132 = scmp.ne.s32.totalorder %s117, %s131
    %p133 = scmp.eq.s32.totalorder %s23, 0
    %p134 = por %p132, %p133
    %s136 = sadd.s32 %s135, 1
    %p139 = scmp.eq.s32.totalorder %s17, 1
    %p140 = scmp.ne.s32.totalorder %s135, %s137
    %p141 = scmp.eq.s32.totalorder %s17, 0
    %p142 = por %p140, %p141
    %p143 = scmp.ne.s32.totalorder %s135, %s137
    %p144 = scmp.eq.s32.totalorder %s22, 1
    %p145 = por %p143, %p144
    %p146 = scmp.ne.s32.totalorder %s137, %s138
    %p147 = scmp.eq.s32.totalorder %s22, 0
    %p148 = por %p146, %p147
    %p149 = scmp.ne.s32.totalorder %s137, %s138
    %p150 = scmp.eq.s32.totalorder %s23, 1
    %p151 = por %p149, %p150
    %p153 = scmp.ne.s32.totalorder %s138, %s152
    %p154 = scmp.eq.s32.totalorder %s23, 0
    %p155 = por %p153, %p154
    %s157 = sadd.s32 %s156, 1
    %p160 = scmp.eq.s32.totalorder %s17, 1
    %p161 = scmp.ne.s32.totalorder %s156, %s158
    %p162 = scmp.eq.s32.totalorder %s17, 0
    %p163 = por %p161, %p162
    %p164 = scmp.ne.s32.totalorder %s156, %s158
    %p165 = scmp.eq.s32.totalorder %s22, 1
    %p166 = por %p164, %p165
    %p167 = scmp.ne.s32.totalorder %s158, %s159
    %p168 = scmp.eq.s32.totalorder %s22, 0
    %p169 = por %p167, %p168
    %p170 = scmp.ne.s32.totalorder %s158, %s159
    %p171 = scmp.eq.s32.totalorder %s23, 1
    %p172 = por %p170, %p171
    %p174 = scmp.ne.s32.totalorder %s159, %s173
    %p175 = scmp.eq.s32.totalorder %s23, 0
    %p176 = por %p174, %p175
    %s178 = sadd.s32 %s177, 1
    %p181 = scmp.eq.s32.totalorder %s17, 1
    %p182 = scmp.ne.s32.totalorder %s177, %s179
    %p183 = scmp.eq.s32.totalorder %s17, 0
    %p184 = por %p182, %p183
    %p185 = scmp.ne.s32.totalorder %s177, %s179
    %p186 = scmp.eq.s32.totalorder %s22, 1
    %p187 = por %p185, %p186
    %p188 = scmp.ne.s32.totalorder %s179, %s180
    %p189 = scmp.eq.s32.totalorder %s22, 0
    %p190 = por %p188, %p189
    %p191 = scmp.ne.s32.totalorder %s179, %s180
    %p192 = scmp.eq.s32.totalorder %s23, 1
    %p193 = por %p191, %p192
    %p195 = scmp.ne.s32.totalorder %s180, %s194
    %p196 = scmp.eq.s32.totalorder %s23, 0
    %p197 = por %p195, %p196
    %s198 = ssub.s32 %s17, %s24
    %p199 = scmp.eq.s32.totalorder %s198, 0
    %s201 = sadd.s32 %s200, 1
    %s202 = scalar_select %p199, %s200, %s201
    %p205 = pneg %p199
    %p206 = scmp.eq.s32.totalorder %s17, 1
    %p207 = por %p205, %p206
    %p208 = scmp.ne.s32.totalorder %s200, %s203
    %p209 = scmp.eq.s32.totalorder %s17, 0
    %p210 = por %p208, %p209
    %p211 = scmp.ne.s32.totalorder %s200, %s203
    %p212 = scmp.eq.s32.totalorder %s22, 1
    %p213 = por %p211, %p212
    %p214 = scmp.ne.s32.totalorder %s203, %s204
    %p215 = scmp.eq.s32.totalorder %s22, 0
    %p216 = por %p214, %p215
    %p217 = scmp.ne.s32.totalorder %s203, %s204
    %p218 = scmp.eq.s32.totalorder %s23, 1
    %p219 = por %p217, %p218
    %p221 = scmp.ne.s32.totalorder %s204, %s220
    %p222 = scmp.eq.s32.totalorder %s23, 0
    %p223 = por %p221, %p222
    %s224 = ssub.s32 %s17, %s24
    %p225 = scmp.eq.s32.totalorder %s224, 0
    %s227 = sadd.s32 %s226, 1
    %s228 = scalar_select %p225, %s226, %s227
    %p231 = pneg %p225
    %p232 = scmp.eq.s32.totalorder %s17, 1
    %p233 = por %p231, %p232
    %p234 = scmp.ne.s32.totalorder %s226, %s229
    %p235 = scmp.eq.s32.totalorder %s17, 0
    %p236 = por %p234, %p235
    %p237 = scmp.ne.s32.totalorder %s226, %s229
    %p238 = scmp.eq.s32.totalorder %s22, 1
    %p239 = por %p237, %p238
    %p240 = scmp.ne.s32.totalorder %s229, %s230
    %p241 = scmp.eq.s32.totalorder %s22, 0
    %p242 = por %p240, %p241
    %p243 = scmp.ne.s32.totalorder %s229, %s230
    %p244 = scmp.eq.s32.totalorder %s23, 1
    %p245 = por %p243, %p244
    %p247 = scmp.ne.s32.totalorder %s230, %s246
    %p248 = scmp.eq.s32.totalorder %s23, 0
    %p249 = por %p247, %p248
    %s250 = ssub.s32 %s17, %s24
    %p251 = scmp.eq.s32.totalorder %s250, 0
    %s253 = sadd.s32 %s252, 1
    %s254 = scalar_select %p251, %s252, %s253
    %p257 = pneg %p251
    %p258 = scmp.eq.s32.totalorder %s17, 1
    %p259 = por %p257, %p258
    %p260 = scmp.ne.s32.totalorder %s252, %s255
    %p261 = scmp.eq.s32.totalorder %s17, 0
    %p262 = por %p260, %p261
    %p263 = scmp.ne.s32.totalorder %s252, %s255
    %p264 = scmp.eq.s32.totalorder %s22, 1
    %p265 = por %p263, %p264
    %p266 = scmp.ne.s32.totalorder %s255, %s256
    %p267 = scmp.eq.s32.totalorder %s22, 0
    %p268 = por %p266, %p267
    %p269 = scmp.ne.s32.totalorder %s255, %s256
    %p270 = scmp.eq.s32.totalorder %s23, 1
    %p271 = por %p269, %p270
    %p273 = scmp.ne.s32.totalorder %s256, %s272
    %p274 = scmp.eq.s32.totalorder %s23, 0
    %p275 = por %p273, %p274
    %p276 = scmp.le.s32.totalorder 1, %s17
    %p277 = scmp.lt.s32.totalorder %s17, 3
    %p278 = pnand %p276, %p277
    %p279 = pneg %p278
    // Predicated region
    $region9: #{conv_module_forward.2} parent=5 // pred_check
      _
    $region10: #{conv_module_forward.2} parent=5 // pred_check_branch
      %281 = sbr.rel (%p278) target = $region12
    $region11: #{conv_module_forward.2} parent=5 // pred_region
      %s282 = ssub.s32 %s17, 1
      // Predicated region
      $region13: #{conv_module_forward.2} parent=11 // pred_check
        %p283 = pneg %p64
      $region14: #{conv_module_forward.2} parent=11 // pred_check_branch
        %285 = sbr.rel (%p283) target = $region16
      $region15: #{conv_module_forward.2} parent=11 // pred_region
        _
      $region16: #{conv_module_forward.2} parent=11 // pred_fallthru
        _
      // Predicated region
      $region17: #{conv_module_forward.2} parent=11 // pred_check
        %p286 = pneg %p85
      $region18: #{conv_module_forward.2} parent=11 // pred_check_branch
        %288 = sbr.rel (%p286) target = $region20
      $region19: #{conv_module_forward.2} parent=11 // pred_region
        _
      $region20: #{conv_module_forward.2} parent=11 // pred_fallthru
        _
      // Predicated region
      $region21: #{conv_module_forward.2} parent=11 // pred_check
        %p289 = pneg %p106
      $region22: #{conv_module_forward.2} parent=11 // pred_check_branch
        %291 = sbr.rel (%p289) target = $region24
      $region23: #{conv_module_forward.2} parent=11 // pred_region
        _
      $region24: #{conv_module_forward.2} parent=11 // pred_fallthru
        _
      // Predicated region
      $region25: #{conv_module_forward.2} parent=11 // pred_check
        %p292 = pneg %p127
      $region26: #{conv_module_forward.2} parent=11 // pred_check_branch
        %294 = sbr.rel (%p292) target = $region28
      $region27: #{conv_module_forward.2} parent=11 // pred_region
        _
      $region28: #{conv_module_forward.2} parent=11 // pred_fallthru
        _
      // Predicated region
      $region29: #{conv_module_forward.2} parent=11 // pred_check
        %p295 = pneg %p148
      $region30: #{conv_module_forward.2} parent=11 // pred_check_branch
        %297 = sbr.rel (%p295) target = $region32
      $region31: #{conv_module_forward.2} parent=11 // pred_region
        _
      $region32: #{conv_module_forward.2} parent=11 // pred_fallthru
        _
      // Predicated region
      $region33: #{conv_module_forward.2} parent=11 // pred_check
        %p298 = pneg %p169
      $region34: #{conv_module_forward.2} parent=11 // pred_check_branch
        %300 = sbr.rel (%p298) target = $region36
      $region35: #{conv_module_forward.2} parent=11 // pred_region
        _
      $region36: #{conv_module_forward.2} parent=11 // pred_fallthru
        _
      // Predicated region
      $region37: #{conv_module_forward.2} parent=11 // pred_check
        %p301 = pneg %p190
      $region38: #{conv_module_forward.2} parent=11 // pred_check_branch
        %303 = sbr.rel (%p301) target = $region40
      $region39: #{conv_module_forward.2} parent=11 // pred_region
        _
      $region40: #{conv_module_forward.2} parent=11 // pred_fallthru
        _
    $region12: #{conv_module_forward.2} parent=5 // pred_fallthru
      _
    %p304 = scmp.lt.s32.totalorder %s17, 2
    // Predicated region
    $region41: #{conv_module_forward.2} parent=5 // pred_check
      %p305 = pneg %p304
    $region42: #{conv_module_forward.2} parent=5 // pred_check_branch
      %307 = sbr.rel (%p305) target = $region44
    $region43: #{conv_module_forward.2} parent=5 // pred_region
      // Predicated region
      $region45: #{conv_module_forward.2} parent=43 // pred_check
        %p308 = pneg %p37
      $region46: #{conv_module_forward.2} parent=43 // pred_check_branch
        %310 = sbr.rel (%p308) target = $region48
      $region47: #{conv_module_forward.2} parent=43 // pred_region
        %p311 = scmp.lt.s32.totalorder %s17, 1
        %s312 = scalar_select %p311, %s17, 1
        %s313 = smul.addr %s312, 2
        %s314 = smul.addr %s313, 8
        %s315 = scalar_lea.vmem %s0, %s314
      $region48: #{conv_module_forward.2} parent=43 // pred_fallthru
        _
    $region44: #{conv_module_forward.2} parent=5 // pred_fallthru
      _
    %p316 = scmp.le.s32.totalorder 1, %s17
    %p317 = scmp.lt.s32.totalorder %s17, 3
    %p318 = pnand %p316, %p317
    %p319 = pneg %p318
    // Predicated region
    $region49: #{conv_module_forward.2} parent=5 // pred_check
      _
    $region50: #{conv_module_forward.2} parent=5 // pred_check_branch
      %321 = sbr.rel (%p318) target = $region52
    $region51: #{conv_module_forward.2} parent=5 // pred_region
      %s322 = ssub.s32 %s17, 1
      %p323 = scmp.lt.s32.totalorder %s22, 1
      %s324 = scalar_select %p323, %s22, 1
      %s325 = smul.addr %s324, 2
      %s326 = smul.addr %s325, 8
      %s327 = scalar_lea.vmem %s0, %s326
      %p328 = pneg %p43
      %p329 = pneg %p40
      %p330 = pneg %p64
      %p331 = pneg %p61
      %p332 = pneg %p85
      %p333 = pneg %p82
      %p334 = pneg %p106
      %p335 = pneg %p103
      %p336 = pneg %p127
      %p337 = pneg %p124
      %p338 = pneg %p148
      %p339 = pneg %p145
      %p340 = pneg %p169
      %p341 = pneg %p166
      %p342 = pneg %p190
      %p343 = pneg %p187
      %p344 = pneg %p216
      %p345 = pneg %p213
      %p346 = scmp.lt.s32.totalorder %s22, 1
      %s347 = scalar_select %p346, %s22, 1
      %s348 = smul.addr %s347, 2
      %s349 = smul.addr %s348, 4
      %s350 = scalar_lea.vmem %s8, %s349
      %p351 = pneg %p242
      %p352 = pneg %p239
      %p353 = scmp.lt.s32.totalorder %s22, 1
      %s354 = scalar_select %p353, %s22, 1
      %s355 = scalar_lea.vmem %s9, %s354
      %p356 = pneg %p268
      %p357 = pneg %p265
      %p358 = scmp.lt.s32.totalorder %s22, 1
      %s359 = scalar_select %p358, %s22, 1
      %s360 = scalar_lea.vmem %s10, %s359
      %p361 = scmp.lt.s32.totalorder %s22, 1
      %s362 = scalar_select %p361, %s22, 1
      %s363 = smul.addr %s362, 2
      %s364 = smul.addr %s363, 8
      %s365 = scalar_lea.vmem %s0, %s364
      %p366 = scmp.lt.s32.totalorder %s22, 1
      %s367 = scalar_select %p366, %s22, 1
      %s368 = smul.addr %s367, 2
      %s369 = smul.addr %s368, 4
      %s370 = scalar_lea.vmem %s8, %s369
      %p371 = scmp.lt.s32.totalorder %s22, 1
      %s372 = scalar_select %p371, %s22, 1
      %s373 = scalar_lea.vmem %s9, %s372
      %p374 = scmp.lt.s32.totalorder %s22, 1
      %s375 = scalar_select %p374, %s22, 1
      %s376 = scalar_lea.vmem %s10, %s375
      %vm378 = vcmask 519168
      %379 = vst.msk [vmem:[#allocation2] sm:$0xf] %vm378, 0
      %380 = vst.msk [vmem:[#allocation2 + $0x4] sm:$0xf] %vm378, 0
      %vm381 = vcmask 517120
      %vm382 = vsmask.f32 1280
      %vm383 = vmand %vm381, %vm382
      %v384 = vld [vmem:[#allocation2 + $0x10] sm:$0x3]
      %v385 = vsel %vm383, 0, %v384
      %386 = vst [vmem:[#allocation2 + $0x10] sm:$0x3] %v385
      %v387 = vld [vmem:[%s365] sm:$0xff]
      %v388 = vld [vmem:[%s365 + $0x8] sm:$0xff]
      %vm389 = vcmask 261120
      %v390 = vsel %vm389, %v387, 0.0
      %391 = vadd.xlane.f32.xlu0 %v390
      %v392 = vpop.xlane.xlu0 %391
      %v393 = vsel %vm389, %v388, 0.0
      %394 = vadd.xlane.f32.xlu0 %v393
      %v395 = vpop.xlane.xlu0 %394
      %v396 = vrcp.pop 32.0
      %v397 = vmul.f32 %v392, %v396
      %v398 = vmul.f32 %v395, %v396
      %v399 = vsub.f32 %v387, %v397
      %v400 = vsub.f32 %v388, %v398
      %v401 = vmul.f32 %v399, %v399
      %v402 = vmul.f32 %v400, %v400
      %v403 = vsel %vm389, %v401, 0.0
      %404 = vadd.xlane.f32.xlu0 %v403
      %v405 = vpop.xlane.xlu0 %404
      %v406 = vsel %vm389, %v402, 0.0
      %407 = vadd.xlane.f32.xlu0 %v406
      %v408 = vpop.xlane.xlu0 %407
      %v409 = vmul.f32 %v405, %v396
      %v410 = vmul.f32 %v408, %v396
      %v411 = vadd.f32 %v409, 1e-05
      %v412 = vadd.f32 %v410, 1e-05
      %v413 = vrsqrt.pop %v411
      %v414 = vrsqrt.pop %v412
      %v415 = vmul.f32 %v399, %v413
      %v416 = vmul.f32 %v400, %v414
      %v417 = vld [vmem:[%s1] sm:$0x1]
      %v419 = vlaneseq
      %v420 = vshrl.u32 %v419, 7
      %v421 = vsub.s32 0, %v420
      %v422 = vrot.slane %v417, %v421
      %v424 = vmul.f32 %v415, %v422
      %v425 = vmul.f32 %v416, %v422
      %v426 = vld [vmem:[%s2] sm:$0x1]
      %v428 = vlaneseq
      %v429 = vshrl.u32 %v428, 7
      %v430 = vsub.s32 0, %v429
      %v431 = vrot.slane %v426, %v430
      %v433 = vadd.f32 %v424, %v431
      %v434 = vadd.f32 %v425, %v431
      %v435 = vpack.c.bf16 %v434, %v433
      %v436 = vld [vmem:[%s3] sm:$0xf]
      %v437 = vld [vmem:[%s3 + $0x4] sm:$0xf]
      %v438 = vld [vmem:[%s3 + $0x8] sm:$0xf]
      %v439 = vld [vmem:[%s3 + $0xc] sm:$0xf]
      %v440 = vld [vmem:[%s4] sm:$0x1]
      %v442 = vlaneseq
      %v443 = vshrl.u32 %v442, 7
      %v444 = vsub.s32 0, %v443
      %v445 = vrot.slane %v440, %v444
      %v451 = vunpack.c.l.b16 %v436
      %v452 = vunpack.c.l.b16 %v437
      %v453 = vunpack.c.l.b16 %v438
      %v454 = vunpack.c.l.b16 %v439
      %v455 = vpack.c.b16 %v452, %v451
      %v456 = vpack.c.b16 %v454, %v453
      %v460 = vsel %vm389, %v435, 0
      %462 = vmatprep.subr.bf16.mxu0 0
      %463 = vmatpush1.bf16.msra.mxu0 %v455
      %464 = vmatprep.subr.bf16.mxu0 0
      %465 = vmatpush1.bf16.msra.mxu0 %v456
      %466 = vmatprep.subr.bf16.mxu0 0
      %467 = vmatpush1.bf16.msra.mxu0 0
      %468 = vmatprep.subr.bf16.mxu0 0
      %469 = vmatpush1.bf16.msra.mxu0 0
      %470 = vmatprep.subr.bf16.mxu0 0
      %471 = vmatpush1.bf16.msra.mxu0 0
      %472 = vmatprep.subr.bf16.mxu0 0
      %473 = vmatpush1.bf16.msra.mxu0 0
      %474 = vmatprep.subr.bf16.mxu0 0
      %475 = vmatpush1.bf16.msra.mxu0 0
      %476 = vmatprep.subr.bf16.mxu0 0
      %477 = vmatpush1.bf16.msra.mxu0 0
      %478 = vmatprep.subr.bf16.mxu0 0
      %479 = vmatpush1.bf16.msra.mxu0 0
      %480 = vmatprep.subr.bf16.mxu0 0
      %481 = vmatpush1.bf16.msra.mxu0 0
      %482 = vmatprep.subr.bf16.mxu0 0
      %483 = vmatpush1.bf16.msra.mxu0 0
      %484 = vmatprep.subr.bf16.mxu0 0
      %485 = vmatpush1.bf16.msra.mxu0 0
      %486 = vmatprep.subr.bf16.mxu0 0
      %487 = vmatpush1.bf16.msra.mxu0 0
      %488 = vmatprep.subr.bf16.mxu0 0
      %489 = vmatpush1.bf16.msra.mxu0 0
      %490 = vmatprep.subr.bf16.mxu0 0
      %491 = vmatpush1.bf16.msra.mxu0 0
      %492 = vmatprep.subr.bf16.mxu0 0
      %493 = vmatpush1.bf16.msra.mxu0 0
      %494 = vmatprep.mubr.bf16.mxu0 0
      %495 = vmatmul.mubr.bf16.gmra.mrb[0].mxu0 %v460
      %v496 = vpop.f32.mrb[0].mxu0
      %v497 = vadd.f32 %v445, %v496
      %v498 = vpop.f32.mrb[0].mxu0
      %v499 = vpop.f32.mrb[0].mxu0
      %v500 = vadd.f32 %v445, %v499
      %v501 = vpop.f32.mrb[0].mxu0
      %502 = vdwg.mxu0
      %v503 = vld [vmem:[%s5] sm:$0xf]
      %v504 = vld [vmem:[%s5 + $0x4] sm:$0xf]
      %v505 = vld [vmem:[%s5 + $0x8] sm:$0xf]
      %v506 = vld [vmem:[%s5 + $0xc] sm:$0xf]
      %v507 = vld [vmem:[%s6] sm:$0x1]
      %v509 = vlaneseq
      %v510 = vshrl.u32 %v509, 7
      %v511 = vsub.s32 0, %v510
      %v512 = vrot.slane %v507, %v511
      %v518 = vunpack.c.l.b16 %v503
      %v519 = vunpack.c.l.b16 %v504
      %v520 = vunpack.c.l.b16 %v505
      %v521 = vunpack.c.l.b16 %v506
      %v522 = vpack.c.b16 %v519, %v518
      %v523 = vpack.c.b16 %v521, %v520
      %526 = vmatprep.subr.bf16.mxu0 0
      %527 = vmatpush1.bf16.msra.mxu0 %v522
      %528 = vmatprep.subr.bf16.mxu0 0
      %529 = vmatpush1.bf16.msra.mxu0 %v523
      %530 = vmatprep.subr.bf16.mxu0 0
      %531 = vmatpush1.bf16.msra.mxu0 0
      %532 = vmatprep.subr.bf16.mxu0 0
      %533 = vmatpush1.bf16.msra.mxu0 0
      %534 = vmatprep.subr.bf16.mxu0 0
      %535 = vmatpush1.bf16.msra.mxu0 0
      %536 = vmatprep.subr.bf16.mxu0 0
      %537 = vmatpush1.bf16.msra.mxu0 0
      %538 = vmatprep.subr.bf16.mxu0 0
      %539 = vmatpush1.bf16.msra.mxu0 0
      %540 = vmatprep.subr.bf16.mxu0 0
      %541 = vmatpush1.bf16.msra.mxu0 0
      %542 = vmatprep.subr.bf16.mxu0 0
      %543 = vmatpush1.bf16.msra.mxu0 0
      %544 = vmatprep.subr.bf16.mxu0 0
      %545 = vmatpush1.bf16.msra.mxu0 0
      %546 = vmatprep.subr.bf16.mxu0 0
      %547 = vmatpush1.bf16.msra.mxu0 0
      %548 = vmatprep.subr.bf16.mxu0 0
      %549 = vmatpush1.bf16.msra.mxu0 0
      %550 = vmatprep.subr.bf16.mxu0 0
      %551 = vmatpush1.bf16.msra.mxu0 0
      %552 = vmatprep.subr.bf16.mxu0 0
      %553 = vmatpush1.bf16.msra.mxu0 0
      %554 = vmatprep.subr.bf16.mxu0 0
      %555 = vmatpush1.bf16.msra.mxu0 0
      %556 = vmatprep.subr.bf16.mxu0 0
      %557 = vmatpush1.bf16.msra.mxu0 0
      %558 = vmatprep.mubr.bf16.mxu0 0
      %559 = vmatmul.mubr.bf16.gmra.mrb[0].mxu0 %v460
      %v560 = vpop.f32.mrb[0].mxu0
      %v561 = vadd.f32 %v512, %v560
      %v562 = vpop.f32.mrb[0].mxu0
      %v563 = vpop.f32.mrb[0].mxu0
      %v564 = vadd.f32 %v512, %v563
      %v565 = vpop.f32.mrb[0].mxu0
      %566 = vdwg.mxu0
      %v567 = vxor.u32 %v561, 2147483648
      %v568 = vxor.u32 %v564, 2147483648
      %v569 = vmul.f32 %v567, 1.442695
      %v570 = vpow.pop %v569
      %v571 = vmul.f32 %v568, 1.442695
      %v572 = vpow.pop %v571
      %v573 = vadd.f32 %v570, 1.0
      %v574 = vadd.f32 %v572, 1.0
      %v575 = vrcp.pop %v573
      %v576 = vmul.f32 1.0, %v575
      %v577 = vrcp.pop %v574
      %v578 = vmul.f32 1.0, %v577
      %v579 = vmul.f32 %v497, %v576
      %v580 = vmul.f32 %v500, %v578
      %v581 = vpack.c.bf16 %v580, %v579
      %v583 = vunpack.c.l.b16 %v581
      %v584 = vunpack.c.h.b16 %v581
      %v585 = vpack.c.b16 %v583, %v583
      %v586 = vpack.c.b16 %v584, %v584
      %589 = vst.msk [vmem:[#allocation2 + $0x8] sm:$0xf] %vm378, %v585
      %590 = vst.msk [vmem:[#allocation2 + $0xc] sm:$0xf] %vm378, %v586
      %v591 = vld [vmem:[%s7] sm:$0x7f]
      %v592 = vld [vmem:[#allocation2 + $0x4] sm:$0xc]
      %v593 = vld [vmem:[#allocation2 + $0x8] sm:$0xf]
      %v594 = vld [vmem:[#allocation2 + $0xc] sm:$0x7]
      %v595 = vunpack.c.l.bf16 %v592
      %v596 = vunpack.c.l.bf16 %v593
      %v597 = vunpack.c.l.bf16 %v594
      %v598 = vlaneseq
      %v599 = vshrl.u32 %v598, 7
      %v600 = vsub.s32 0, %v599
      %v601 = vrot.slane %v591, %v600
      %v602 = vmul.f32 %v595, %v601
      %v603 = vmul.f32 %v596, %v601
      %v604 = vmul.f32 %v597, %v601
      %v605 = vld [vmem:[#allocation2 + $0x4] sm:$0x8]
      %v606 = vunpack.c.l.bf16 %v605
      %v607 = vlaneseq
      %v608 = vshrl.u32 %v607, 7
      %v609 = vsub.s32 1, %v608
      %v610 = vrot.slane %v591, %v609
      %v611 = vmul.f32 %v606, %v610
      %v612 = vmul.f32 %v596, %v610
      %v613 = vmul.f32 %v597, %v610
      %vm617 = vcmask 1046528
      %v618 = vrot.slane %v611, 1
      %v619 = vrot.slane %v612, 1
      %v620 = vsel %vm617, %v618, %v619
      %v621 = vrot.slane %v613, 1
      %v622 = vsel %vm617, %v619, %v621
      %v626 = vadd.f32 %v602, %v620
      %v627 = vadd.f32 %v603, %v622
      %v628 = vadd.f32 %v604, %v621
      %v629 = vld [vmem:[#allocation2 + $0xc] sm:$0xf]
      %v630 = vunpack.c.l.bf16 %v629
      %v631 = vlaneseq
      %v632 = vshrl.u32 %v631, 7
      %v633 = vsub.s32 2, %v632
      %v634 = vrot.slane %v591, %v633
      %v635 = vmul.f32 %v606, %v634
      %v636 = vmul.f32 %v596, %v634
      %v637 = vmul.f32 %v630, %v634
      %vm641 = vcmask 1045504
      %v642 = vrot.slane %v635, 2
      %v643 = vrot.slane %v636, 2
      %v644 = vsel %vm641, %v642, %v643
      %v645 = vrot.slane %v637, 2
      %v646 = vsel %vm641, %v643, %v645
      %v650 = vadd.f32 %v626, %v644
      %v651 = vadd.f32 %v627, %v646
      %v652 = vadd.f32 %v628, %v645
      %v653 = vlaneseq
      %v654 = vshrl.u32 %v653, 7
      %v655 = vsub.s32 3, %v654
      %v656 = vrot.slane %v591, %v655
      %v657 = vmul.f32 %v596, %v656
      %v658 = vmul.f32 %v630, %v656
      %vm661 = vcmask 1044480
      %v662 = vrot.slane %v657, 3
      %v663 = vrot.slane %v658, 3
      %v664 = vsel %vm661, %v662, %v663
      %v668 = vadd.f32 %v650, %v662
      %v669 = vadd.f32 %v651, %v664
      %v670 = vadd.f32 %v652, %v663
      %v671 = vld [vmem:[#allocation2 + $0x10] sm:$0x1]
      %v672 = vunpack.c.l.bf16 %v671
      %v673 = vlaneseq
      %v674 = vshrl.u32 %v673, 7
      %v675 = vsub.s32 4, %v674
      %v676 = vrot.slane %v591, %v675
      %v677 = vmul.f32 %v596, %v676
      %v678 = vmul.f32 %v630, %v676
      %v679 = vmul.f32 %v672, %v676
      %vm683 = vcmask 1043456
      %v684 = vrot.slane %v677, 4
      %v685 = vrot.slane %v678, 4
      %v686 = vsel %vm683, %v684, %v685
      %v687 = vrot.slane %v679, 4
      %v688 = vsel %vm683, %v685, %v687
      %v692 = vadd.f32 %v668, %v684
      %v693 = vadd.f32 %v669, %v686
      %v694 = vadd.f32 %v670, %v688
      %v695 = vld [vmem:[#allocation2 + $0x8] sm:$0xe]
      %v696 = vunpack.c.l.bf16 %v695
      %v697 = vlaneseq
      %v698 = vshrl.u32 %v697, 7
      %v699 = vsub.s32 5, %v698
      %v700 = vrot.slane %v591, %v699
      %v701 = vmul.f32 %v696, %v700
      %v702 = vmul.f32 %v630, %v700
      %v703 = vmul.f32 %v672, %v700
      %vm707 = vcmask 1042432
      %v708 = vrot.slane %v701, 5
      %v709 = vrot.slane %v702, 5
      %v710 = vsel %vm707, %v708, %v709
      %v711 = vrot.slane %v703, 5
      %v712 = vsel %vm707, %v709, %v711
      %v716 = vadd.f32 %v692, %v708
      %v717 = vadd.f32 %v693, %v710
      %v718 = vadd.f32 %v694, %v712
      %v719 = vld [vmem:[#allocation2 + $0x10] sm:$0x3]
      %v720 = vunpack.c.l.bf16 %v719
      %v721 = vlaneseq
      %v722 = vshrl.u32 %v721, 7
      %v723 = vsub.s32 6, %v722
      %v724 = vrot.slane %v591, %v723
      %v725 = vmul.f32 %v696, %v724
      %v726 = vmul.f32 %v630, %v724
      %v727 = vmul.f32 %v720, %v724
      %vm731 = vcmask 1041408
      %v732 = vrot.slane %v725, 6
      %v733 = vrot.slane %v726, 6
      %v734 = vsel %vm731, %v732, %v733
      %v735 = vrot.slane %v727, 6
      %v736 = vsel %vm731, %v733, %v735
      %v740 = vadd.f32 %v716, %v732
      %v741 = vadd.f32 %v717, %v734
      %v742 = vadd.f32 %v718, %v736
      %v746 = vrot.slane %v740, 5
      %v747 = vrot.slane %v741, 5
      %v748 = vsel %vm707, %v746, %v747
      %v749 = vrot.slane %v742, 5
      %v750 = vsel %vm707, %v747, %v749
      %vm753 = vcmask 523264
      %v754 = vsel %vm753, %v748, 0.0
      %v755 = vsel %vm753, %v750, 0.0
      %v756 = vadd.f32 %v754, %v755
      %v757 = vrot.slane %v756, 4
      %v758 = vadd.f32 %v756, %v757
      %v759 = vrot.slane %v758, 2
      %v760 = vadd.f32 %v758, %v759
      %v761 = vrot.slane %v760, 1
      %v762 = vadd.f32 %v760, %v761
      %v763 = vmul.f32 %v762, 0.0625
      %vm764 = vcmask 516096
      %765 = vst.msk [vmem:[%s373] sm:$0x1] %vm764, %v762
      %v766 = vsub.f32 %v740, %v763
      %v767 = vsub.f32 %v741, %v763
      %v768 = vsub.f32 %v742, %v763
      %v769 = vmul.f32 %v766, %v766
      %v770 = vmul.f32 %v767, %v767
      %v771 = vmul.f32 %v768, %v768
      %v775 = vrot.slane %v769, 5
      %v776 = vrot.slane %v770, 5
      %v777 = vsel %vm707, %v775, %v776
      %v778 = vrot.slane %v771, 5
      %v779 = vsel %vm707, %v776, %v778
      %v782 = vsel %vm753, %v777, 0.0
      %v783 = vsel %vm753, %v779, 0.0
      %v784 = vadd.f32 %v782, %v783
      %v785 = vrot.slane %v784, 4
      %v786 = vadd.f32 %v784, %v785
      %v787 = vrot.slane %v786, 2
      %v788 = vadd.f32 %v786, %v787
      %v789 = vrot.slane %v788, 1
      %v790 = vadd.f32 %v788, %v789
      %791 = vst.msk [vmem:[%s376] sm:$0x1] %vm764, %v790
      %v792 = vpack.c.bf16 %v741, %v740
      %v793 = vpack.c.bf16 %v742, %v742
      %v796 = vunpack.c.l.b16 %v792
      %v797 = vunpack.c.h.b16 %v792
      %v798 = vunpack.c.l.b16 %v793
      %v799 = vpack.c.b16 %v796, %v796
      %v800 = vpack.c.b16 %v797, %v797
      %v801 = vpack.c.b16 %v798, %v798
      %vm802 = vsmask.f32 5392
      %vm803 = vmor %vm382, %vm802
      %v805 = vshrl.u32 %v799, 16
      %v807 = vrot.slane %v805, 6
      %v808 = vshll.u32 %v799, 16
      %v810 = vrot.slane %v808, 7
      %v811 = vor.u32 %v807, %v810
      %v812 = vrot.slane %v811, 4
      %v814 = vshrl.u32 %v800, 16
      %v816 = vrot.slane %v814, 6
      %v817 = vshll.u32 %v800, 16
      %v819 = vrot.slane %v817, 7
      %v820 = vor.u32 %v816, %v819
      %v821 = vsel %vm803, %v812, %v820
      %v822 = vrot.slane %v820, 4
      %v824 = vshrl.u32 %v801, 16
      %v826 = vrot.slane %v824, 6
      %v827 = vshll.u32 %v801, 16
      %v829 = vrot.slane %v827, 7
      %v830 = vor.u32 %v826, %v829
      %v831 = vsel %vm803, %v822, %v830
      %834 = vst.msk [vmem:[%s370] sm:$0xf] %vm378, %v821
      %835 = vst.msk [vmem:[%s370 + $0x4] sm:$0xf] %vm378, %v831
      %p836 = scmp.lt.s32.totalorder %s22, 1
      %s837 = scalar_select %p836, %s22, 1
      %s838 = smul.addr %s837, 2
      %s839 = smul.addr %s838, 4
      %s840 = scalar_lea.vmem %s8, %s839
      %p841 = scmp.lt.s32.totalorder %s22, 1
      %s842 = scalar_select %p841, %s22, 1
      %s843 = scalar_lea.vmem %s9, %s842
      %p844 = scmp.lt.s32.totalorder %s22, 1
      %s845 = scalar_select %p844, %s22, 1
      %s846 = scalar_lea.vmem %s10, %s845
      // Predicated region
      $region53: #{conv_module_forward.2} parent=51 // pred_check
        %p847 = pneg %p213
      $region54: #{conv_module_forward.2} parent=51 // pred_check_branch
        %849 = sbr.rel (%p847) target = $region56
      $region55: #{conv_module_forward.2} parent=51 // pred_region
        _
      $region56: #{conv_module_forward.2} parent=51 // pred_fallthru
        _
      // Predicated region
      $region57: #{conv_module_forward.2} parent=51 // pred_check
        %p850 = pneg %p239
      $region58: #{conv_module_forward.2} parent=51 // pred_check_branch
        %852 = sbr.rel (%p850) target = $region60
      $region59: #{conv_module_forward.2} parent=51 // pred_region
        _
      $region60: #{conv_module_forward.2} parent=51 // pred_fallthru
        _
      // Predicated region
      $region61: #{conv_module_forward.2} parent=51 // pred_check
        %p853 = pneg %p265
      $region62: #{conv_module_forward.2} parent=51 // pred_check_branch
        %855 = sbr.rel (%p853) target = $region64
      $region63: #{conv_module_forward.2} parent=51 // pred_region
        _
      $region64: #{conv_module_forward.2} parent=51 // pred_fallthru
        _
    $region52: #{conv_module_forward.2} parent=5 // pred_fallthru
      _
    %p856 = scmp.le.s32.totalorder 2, %s17
    // Predicated region
    $region65: #{conv_module_forward.2} parent=5 // pred_check
      %p857 = pneg %p856
    $region66: #{conv_module_forward.2} parent=5 // pred_check_branch
      %859 = sbr.rel (%p857) target = $region68
    $region67: #{conv_module_forward.2} parent=5 // pred_region
      %s860 = ssub.s32 %s17, 2
      // Predicated region
      $region69: #{conv_module_forward.2} parent=67 // pred_check
        %p861 = pneg %p219
      $region70: #{conv_module_forward.2} parent=67 // pred_check_branch
        %863 = sbr.rel (%p861) target = $region72
      $region71: #{conv_module_forward.2} parent=67 // pred_region
        %p864 = scmp.lt.s32.totalorder %s23, 1
        %s865 = scalar_select %p864, %s23, 1
        %s866 = smul.addr %s865, 2
        %s867 = smul.addr %s866, 4
        %s868 = scalar_lea.vmem %s8, %s867
      $region72: #{conv_module_forward.2} parent=67 // pred_fallthru
        _
      // Predicated region
      $region73: #{conv_module_forward.2} parent=67 // pred_check
        %p869 = pneg %p245
      $region74: #{conv_module_forward.2} parent=67 // pred_check_branch
        %871 = sbr.rel (%p869) target = $region76
      $region75: #{conv_module_forward.2} parent=67 // pred_region
        %p872 = scmp.lt.s32.totalorder %s23, 1
        %s873 = scalar_select %p872, %s23, 1
        %s874 = scalar_lea.vmem %s9, %s873
      $region76: #{conv_module_forward.2} parent=67 // pred_fallthru
        _
      // Predicated region
      $region77: #{conv_module_forward.2} parent=67 // pred_check
        %p875 = pneg %p271
      $region78: #{conv_module_forward.2} parent=67 // pred_check_branch
        %877 = sbr.rel (%p875) target = $region80
      $region79: #{conv_module_forward.2} parent=67 // pred_region
        %p878 = scmp.lt.s32.totalorder %s23, 1
        %s879 = scalar_select %p878, %s23, 1
        %s880 = scalar_lea.vmem %s10, %s879
      $region80: #{conv_module_forward.2} parent=67 // pred_fallthru
        _
    $region68: #{conv_module_forward.2} parent=5 // pred_fallthru
      _
  $region6: #{conv_module_forward.2} parent=0 // loop_footer
    %s21 = sadd.s32 1, %s17
  $region7: #{conv_module_forward.2} parent=0 // loop_footer_branch
    %16 = sbr.rel target = $region3
  $region8: #{conv_module_forward.2} parent=0 // loop_exit
    _

</llo_original>
